<compile_context>
chip_gen: v7x
topology: tpu7x:2x2x1
jax: 0.10.0
libtpu: 0.0.40
codegen_flags: <defaults>
</compile_context>

<pallas_src>
import functools

import jax
import jax.numpy as jnp
from jax.experimental import pallas as pl
from jax.experimental.pallas import tpu as pltpu


_LANE = 128
_MXU_ROWS = 256          # v6e/v7x MXU height; also a multiple of v5e's 128.


def _round_up(x, m):
    return (x + m - 1) // m * m


def _vmem_budget(bytes_needed):
    """Advisory VMEM limit: footprint + headroom, capped below v7x's 64 MiB."""
    return int(min(max(2 * bytes_needed + (4 << 20), 8 << 20), 48 << 20))


# ----------------------------- Pallas kernels ------------------------------

def _encoder_kernel(meta_ref, tab_ref, w1_ref, b1_ref, w2_ref, b2_ref,
                    *out_refs, vocab: int, with_log_probs: bool):
    """One (tile, F) slab of flattened (B*S) rows:
         x = one_hot(tokens) @ emb_table          (in-kernel gather, MXU)
         y = (relu(x @ W1 + b1) @ W2 + b2) * mask
       optionally fused with log_softmax over the feature axis."""
    meta = meta_ref[...]                                   # (tile, 2) int32
    ids = meta[:, 0:1]                                     # token ids
    mask = meta[:, 1:2].astype(jnp.float32)                # 1.0 inside src_length

    # In-kernel embedding gather as a one-hot matmul: exact (0/1 weights,
    # f32 accumulation) and avoids materializing (B*S, D) in HBM.
    # TODO(synk): for large vocabularies keep the table at memory_space=pl.ANY
    # and DMA-gather rows with pltpu.make_async_copy driven by scalar-prefetched
    # token ids instead of the one-hot matmul.
    rows = meta.shape[0]
    onehot = (ids == jax.lax.broadcasted_iota(jnp.int32, (rows, vocab), 1)
              ).astype(jnp.bfloat16)
    x = jnp.dot(onehot, tab_ref[...],
                preferred_element_type=jnp.float32).astype(jnp.bfloat16)

    # TODO(synk): K-tile W1/W2 (innermost "arbitrary" grid axis + f32 VMEM
    # accumulator) for production-sized D/H so weights also fit v7x's 64 MiB.
    h = jnp.dot(x, w1_ref[...], preferred_element_type=jnp.float32) + b1_ref[...]
    h = jnp.maximum(h, 0.0)
    y = jnp.dot(h.astype(jnp.bfloat16), w2_ref[...],
                preferred_element_type=jnp.float32) + b2_ref[...]
    y = y * mask
    out_refs[0][...] = y

    if with_log_probs:
        # Fused log_softmax: the activation never leaves VMEM for this pass.
        # Padded positions were zeroed above, so their rows come out uniform
        # (-log F), matching the pure-JAX reference in __main__.
        m = jnp.max(y, axis=-1, keepdims=True)
        z = y - m
        s = jnp.sum(jnp.exp(z), axis=-1, keepdims=True)
        out_refs[1][...] = z - jnp.log(s)


def _normalized_probs_kernel(x_ref, o_ref, *, log_probs: bool):
    """Row-wise softmax / log_softmax over the last axis (input already f32)."""
    x = x_ref[...]
    m = jnp.max(x, axis=-1, keepdims=True)
    z = x - m
    e = jnp.exp(z)
    s = jnp.sum(e, axis=-1, keepdims=True)
    if log_probs:
        o_ref[...] = z - jnp.log(s)
    else:
        o_ref[...] = e / s               # exact: rows sum to 1 at f32 precision


# ------------------------------ JAX wrappers -------------------------------

def encoder_forward(src_tokens, src_lengths, params, *, row_tile=1024,
                    return_log_probs=False):
    """FairseqEncoderModel.forward: (B, S) tokens -> (B, S, features).

    If return_log_probs=True, also returns log_softmax(encoder_out) computed
    in the same kernel (fused get_normalized_probs)."""
    B, S = src_tokens.shape
    emb_table, w1, b1, w2, b2 = (params["emb"], params["w1"], params["b1"],
                                 params["w2"], params["b2"])
    vocab, D = emb_table.shape
    H = w1.shape[1]
    F_out = w2.shape[1]

    # Flatten (B, S) into one row axis so the MXU M dim is a full row tile.
    rows = B * S
    row_tile = _round_up(row_tile, _MXU_ROWS)
    tile = min(row_tile, _round_up(rows, _MXU_ROWS))
    rows_pad = _round_up(rows, tile)

    # Per-row metadata stream: [token_id, padding_mask] int32 (8 B/row).
    tok = src_tokens.reshape(rows).astype(jnp.int32)
    msk = (jnp.arange(S, dtype=jnp.int32)[None, :]
           < src_lengths.astype(jnp.int32)[:, None]).astype(jnp.int32)
    meta = jnp.stack([tok, msk.reshape(rows)], axis=-1)
    if rows_pad != rows:
        meta = jnp.pad(meta, ((0, rows_pad - rows), (0, 0)))

    tab_b = emb_table.astype(jnp.bfloat16)
    w1_b = w1.astype(jnp.bfloat16)
    w2_b = w2.astype(jnp.bfloat16)
    b1_2d = b1.reshape(1, H).astype(jnp.float32)
    b2_2d = b2.reshape(1, F_out).astype(jnp.float32)

    n_out = 2 if return_log_probs else 1
    out_shape = tuple(jax.ShapeDtypeStruct((rows_pad, F_out), jnp.float32)
                      for _ in range(n_out))
    out_specs = tuple(pl.BlockSpec((tile, F_out), lambda r: (r, 0))
                      for _ in range(n_out))

    # VMEM footprint: single-buffered bf16 weights, f32 biases, double-buffered
    # int32 meta tiles (lane-padded) and f32 output tiles.
    footprint = (
        2 * (vocab * _round_up(D, _LANE)
             + D * _round_up(H, _LANE)
             + H * _round_up(F_out, _LANE))
        + 4 * 8 * (_round_up(H, _LANE) + _round_up(F_out, _LANE))
        + 2 * 4 * tile * _LANE
        + n_out * 2 * 4 * tile * _round_up(F_out, _LANE))

    outs = pl.pallas_call(
        functools.partial(_encoder_kernel, vocab=vocab,
                          with_log_probs=return_log_probs),
        out_shape=out_shape,
        grid=(rows_pad // tile,),
        in_specs=[
            pl.BlockSpec((tile, 2), lambda r: (r, 0)),
            pl.BlockSpec((vocab, D), lambda r: (0, 0),
                         pipeline_mode=pl.Buffered(1)),   # table resident
            pl.BlockSpec((D, H), lambda r: (0, 0),
                         pipeline_mode=pl.Buffered(1)),   # W1 resident
            pl.BlockSpec((1, H), lambda r: (0, 0),
                         pipeline_mode=pl.Buffered(1)),   # b1
            pl.BlockSpec((H, F_out), lambda r: (0, 0),
                         pipeline_mode=pl.Buffered(1)),   # W2 resident
            pl.BlockSpec((1, F_out), lambda r: (0, 0),
                         pipeline_mode=pl.Buffered(1)),   # b2
        ],
        out_specs=out_specs,
        compiler_params=pltpu.CompilerParams(
            dimension_semantics=("parallel",),
            vmem_limit_bytes=_vmem_budget(footprint)),
    )(meta, tab_b, w1_b, b1_2d, w2_b, b2_2d)

    enc = outs[0][:rows].reshape(B, S, F_out)
    if return_log_probs:
        return enc, outs[1][:rows].reshape(B, S, F_out)
    return enc


def get_normalized_probs(encoder_out, log_probs, *, row_tile=2048):
    """FairseqEncoderModel.get_normalized_probs on a tensor encoder_out."""
    B, S, F_out = encoder_out.shape
    rows = B * S
    x2d = encoder_out.astype(jnp.float32).reshape(rows, F_out)   # `.float()`

    row_tile = _round_up(row_tile, _MXU_ROWS)
    tile = min(row_tile, _round_up(rows, _MXU_ROWS))
    rows_pad = _round_up(rows, tile)
    if rows_pad != rows:
        x2d = jnp.pad(x2d, ((0, rows_pad - rows), (0, 0)))

    footprint = 4 * 4 * tile * _round_up(F_out, _LANE)   # 2 in + 2 out f32 tiles
    out2d = pl.pallas_call(
        functools.partial(_normalized_probs_kernel, log_probs=log_probs),
        out_shape=jax.ShapeDtypeStruct((rows_pad, F_out), jnp.float32),
        grid=(rows_pad // tile,),
        in_specs=[pl.BlockSpec((tile, F_out), lambda i: (i, 0))],
        out_specs=pl.BlockSpec((tile, F_out), lambda i: (i, 0)),
        compiler_params=pltpu.CompilerParams(
            dimension_semantics=("parallel",),
            vmem_limit_bytes=_vmem_budget(footprint)),
    )(x2d)

    return out2d[:rows].reshape(B, S, F_out)


def init_params(key, vocab, embed_dim, hidden, features):
    k_emb, k_w1, k_w2 = jax.random.split(key, 3)
    return {
        "emb": jax.random.normal(k_emb, (vocab, embed_dim), jnp.float32) * 0.1,
        "w1": jax.random.normal(k_w1, (embed_dim, hidden), jnp.float32) * 0.1,
        "b1": jnp.zeros((hidden,), jnp.float32),
        "w2": jax.random.normal(k_w2, (hidden, features), jnp.float32) * 0.1,
        "b2": jnp.zeros((features,), jnp.float32),
    }


# ---------------------------------- main ------------------------------------

if __name__ == "__main__":
    B, S = 2, 8
    # Feature dims are multiples of 128 so all loads/stores are lane-dense.
    VOCAB, EMBED, HIDDEN, FEATURES = 64, 128, 128, 128

    key = jax.random.PRNGKey(0)
    k_tok, k_params = jax.random.split(key)

    src_tokens = jax.random.randint(k_tok, (B, S), 0, VOCAB, dtype=jnp.int32)
    src_lengths = jnp.array([S, S - 3], dtype=jnp.int32)
    params = init_params(k_params, VOCAB, EMBED, HIDDEN, FEATURES)

    # forward() + fused log_softmax (single HBM pass over the activation).
    encoder_out, log_probs_fused = encoder_forward(
        src_tokens, src_lengths, params, return_log_probs=True)
    encoder_out = jax.block_until_ready(encoder_out)
    log_probs_fused = jax.block_until_ready(log_probs_fused)

    # Standalone get_normalized_probs() (API parity with the PyTorch module).
    log_probs = jax.block_until_ready(get_normalized_probs(encoder_out, True))
    probs = jax.block_until_ready(get_normalized_probs(encoder_out, False))

    # Pure-JAX reference (same bf16 matmul inputs, f32 accumulation).
    emb_ref = jnp.take(params["emb"].astype(jnp.bfloat16), src_tokens, axis=0)
    h_ref = jnp.maximum(
        jnp.dot(emb_ref.reshape(-1, EMBED), params["w1"].astype(jnp.bfloat16),
                preferred_element_type=jnp.float32) + params["b1"], 0.0)
    y_ref = (jnp.dot(h_ref.astype(jnp.bfloat16),
                     params["w2"].astype(jnp.bfloat16),
                     preferred_element_type=jnp.float32)
             + params["b2"]).reshape(B, S, FEATURES)
    mask_ref = (jnp.arange(S)[None, :] < src_lengths[:, None]).astype(jnp.float32)
    y_ref = y_ref * mask_ref[..., None]

    assert encoder_out.shape == (B, S, FEATURES)
    assert jnp.allclose(encoder_out, y_ref, atol=1e-2, rtol=1e-2)
    assert jnp.allclose(log_probs_fused, jax.nn.log_softmax(y_ref, axis=-1),
                        atol=1e-2)
    assert jnp.allclose(log_probs, log_probs_fused, atol=1e-4)
    assert jnp.allclose(jnp.sum(probs, axis=-1), 1.0, atol=1e-4)
    assert jnp.allclose(jnp.exp(log_probs), probs, atol=1e-4)

    print("KERNEL_OK")
</pallas_src>

<mosaic_0001>
module attributes {stable_mosaic.version = 11 : i64} {
  func.func @_encoder_kernel(%arg0: i32, %arg1: memref<256x2xi32, #tpu.memory_space<vmem>>, %arg2: memref<64x128xbf16, #tpu.memory_space<vmem>>, %arg3: memref<128x128xbf16, #tpu.memory_space<vmem>>, %arg4: memref<1x128xf32, #tpu.memory_space<vmem>>, %arg5: memref<128x128xbf16, #tpu.memory_space<vmem>>, %arg6: memref<1x128xf32, #tpu.memory_space<vmem>>, %arg7: memref<256x128xf32, #tpu.memory_space<vmem>>, %arg8: memref<256x128xf32, #tpu.memory_space<vmem>>) attributes {dimension_semantics = [#tpu.dimension_semantics<parallel>], iteration_bounds = array<i64: 1>, scalar_prefetch = 0 : i64, scratch_operands = 0 : i64, tpu.core_type = #tpu.core_type<tc>, window_params = [{transform_indices = @transform_0, window_bounds = array<i64: 256, 2>}, {pipeline_mode = #tpu.pipeline_mode<synchronous>, transform_indices = @transform_1, window_bounds = array<i64: 64, 128>}, {pipeline_mode = #tpu.pipeline_mode<synchronous>, transform_indices = @transform_2, window_bounds = array<i64: 128, 128>}, {pipeline_mode = #tpu.pipeline_mode<synchronous>, transform_indices = @transform_3, window_bounds = array<i64: 1, 128>}, {pipeline_mode = #tpu.pipeline_mode<synchronous>, transform_indices = @transform_4, window_bounds = array<i64: 128, 128>}, {pipeline_mode = #tpu.pipeline_mode<synchronous>, transform_indices = @transform_5, window_bounds = array<i64: 1, 128>}, {transform_indices = @transform_6, window_bounds = array<i64: 256, 128>}, {transform_indices = @transform_7, window_bounds = array<i64: 256, 128>}]} {
    %c0 = arith.constant 0 : index
    %c0_0 = arith.constant 0 : index
    %0 = vector.load %arg1[%c0, %c0_0] : memref<256x2xi32, #tpu.memory_space<vmem>>, vector<256x2xi32>
    %1 = vector.extract_strided_slice %0 {offsets = [0, 0], sizes = [256, 1], strides = [1, 1]} : vector<256x2xi32> to vector<256x1xi32>
    %2 = vector.extract_strided_slice %0 {offsets = [0, 1], sizes = [256, 1], strides = [1, 1]} : vector<256x2xi32> to vector<256x1xi32>
    %3 = arith.sitofp %2 : vector<256x1xi32> to vector<256x1xf32>
    %4 = tpu.iota {dimensions = array<i32: 1>} : vector<256x64xi32>
    %5 = vector.broadcast %1 : vector<256x1xi32> to vector<256x64xi32>
    %6 = arith.cmpi eq, %5, %4 : vector<256x64xi32>
    %7 = arith.extui %6 : vector<256x64xi1> to vector<256x64xi32>
    %8 = arith.sitofp %7 : vector<256x64xi32> to vector<256x64xf32>
    %9 = arith.truncf %8 : vector<256x64xf32> to vector<256x64xbf16>
    %c0_1 = arith.constant 0 : index
    %c0_2 = arith.constant 0 : index
    %10 = vector.load %arg2[%c0_1, %c0_2] : memref<64x128xbf16, #tpu.memory_space<vmem>>, vector<64x128xbf16>
    %cst = arith.constant dense<0.000000e+00> : vector<256x128xf32>
    %11 = tpu.matmul %9, %10, %cst {dimension_numbers = #tpu.dot_dimension_numbers<[1], [0], [0], [1], [0, 0, 1, 1], [], []>} : vector<256x64xbf16>, vector<64x128xbf16>, vector<256x128xf32> -> vector<256x128xf32>
    %12 = arith.truncf %11 : vector<256x128xf32> to vector<256x128xbf16>
    %c0_3 = arith.constant 0 : index
    %c0_4 = arith.constant 0 : index
    %13 = vector.load %arg3[%c0_3, %c0_4] : memref<128x128xbf16, #tpu.memory_space<vmem>>, vector<128x128xbf16>
    %cst_5 = arith.constant dense<0.000000e+00> : vector<256x128xf32>
    %14 = tpu.matmul %12, %13, %cst_5 {dimension_numbers = #tpu.dot_dimension_numbers<[1], [0], [0], [1], [0, 0, 1, 1], [], []>} : vector<256x128xbf16>, vector<128x128xbf16>, vector<256x128xf32> -> vector<256x128xf32>
    %c0_6 = arith.constant 0 : index
    %c0_7 = arith.constant 0 : index
    %15 = vector.load %arg4[%c0_6, %c0_7] : memref<1x128xf32, #tpu.memory_space<vmem>>, vector<1x128xf32>
    %16 = vector.broadcast %15 : vector<1x128xf32> to vector<256x128xf32>
    %17 = arith.addf %14, %16 : vector<256x128xf32>
    %cst_8 = arith.constant 0.000000e+00 : f32
    %18 = vector.broadcast %cst_8 : f32 to vector<256x128xf32>
    %19 = arith.maximumf %17, %18 : vector<256x128xf32>
    %20 = arith.truncf %19 : vector<256x128xf32> to vector<256x128xbf16>
    %c0_9 = arith.constant 0 : index
    %c0_10 = arith.constant 0 : index
    %21 = vector.load %arg5[%c0_9, %c0_10] : memref<128x128xbf16, #tpu.memory_space<vmem>>, vector<128x128xbf16>
    %cst_11 = arith.constant dense<0.000000e+00> : vector<256x128xf32>
    %22 = tpu.matmul %20, %21, %cst_11 {dimension_numbers = #tpu.dot_dimension_numbers<[1], [0], [0], [1], [0, 0, 1, 1], [], []>} : vector<256x128xbf16>, vector<128x128xbf16>, vector<256x128xf32> -> vector<256x128xf32>
    %c0_12 = arith.constant 0 : index
    %c0_13 = arith.constant 0 : index
    %23 = vector.load %arg6[%c0_12, %c0_13] : memref<1x128xf32, #tpu.memory_space<vmem>>, vector<1x128xf32>
    %24 = vector.broadcast %23 : vector<1x128xf32> to vector<256x128xf32>
    %25 = arith.addf %22, %24 : vector<256x128xf32>
    %26 = vector.broadcast %3 : vector<256x1xf32> to vector<256x128xf32>
    %27 = arith.mulf %25, %26 : vector<256x128xf32>
    %c0_14 = arith.constant 0 : index
    %c0_15 = arith.constant 0 : index
    %28 = vector.load %arg7[%c0_14, %c0_15] : memref<256x128xf32, #tpu.memory_space<vmem>>, vector<256x128xf32>
    tpu.vector_store %arg7[%c0_14, %c0_15], %27 {strides = array<i32>} : memref<256x128xf32, #tpu.memory_space<vmem>>, vector<256x128xf32>,
    %cst_16 = arith.constant dense<0xFF800000> : vector<256xf32>
    %29 = vector.multi_reduction <maximumf>, %27, %cst_16 [1] : vector<256x128xf32> to vector<256xf32>
    %30 = vector.shape_cast %29 : vector<256xf32> to vector<256x1xf32>
    %31 = vector.broadcast %30 : vector<256x1xf32> to vector<256x128xf32>
    %32 = arith.subf %27, %31 : vector<256x128xf32>
    %33 = math.exp %32 : vector<256x128xf32>
    %cst_17 = arith.constant dense<0.000000e+00> : vector<256xf32>
    %34 = vector.multi_reduction <add>, %33, %cst_17 [1] : vector<256x128xf32> to vector<256xf32>
    %35 = vector.shape_cast %34 : vector<256xf32> to vector<256x1xf32>
    %36 = math.log %35 : vector<256x1xf32>
    %37 = vector.broadcast %36 : vector<256x1xf32> to vector<256x128xf32>
    %38 = arith.subf %32, %37 : vector<256x128xf32>
    %c0_18 = arith.constant 0 : index
    %c0_19 = arith.constant 0 : index
    %39 = vector.load %arg8[%c0_18, %c0_19] : memref<256x128xf32, #tpu.memory_space<vmem>>, vector<256x128xf32>
    tpu.vector_store %arg8[%c0_18, %c0_19], %38 {strides = array<i32>} : memref<256x128xf32, #tpu.memory_space<vmem>>, vector<256x128xf32>,
    return
  }
  func.func @transform_0(%arg0: i32) -> (i32, i32) {
    %c0_i32 = arith.constant 0 : i32
    %c0_i32_0 = arith.constant 0 : i32
    return %arg0, %c0_i32 : i32, i32
  }
  func.func @transform_1(%arg0: i32) -> (i32, i32) {
    %c0_i32 = arith.constant 0 : i32
    %c0_i32_0 = arith.constant 0 : i32
    %c0_i32_1 = arith.constant 0 : i32
    return %c0_i32, %c0_i32_0 : i32, i32
  }
  func.func @transform_2(%arg0: i32) -> (i32, i32) {
    %c0_i32 = arith.constant 0 : i32
    %c0_i32_0 = arith.constant 0 : i32
    %c0_i32_1 = arith.constant 0 : i32
    return %c0_i32, %c0_i32_0 : i32, i32
  }
  func.func @transform_3(%arg0: i32) -> (i32, i32) {
    %c0_i32 = arith.constant 0 : i32
    %c0_i32_0 = arith.constant 0 : i32
    %c0_i32_1 = arith.constant 0 : i32
    return %c0_i32, %c0_i32_0 : i32, i32
  }
  func.func @transform_4(%arg0: i32) -> (i32, i32) {
    %c0_i32 = arith.constant 0 : i32
    %c0_i32_0 = arith.constant 0 : i32
    %c0_i32_1 = arith.constant 0 : i32
    return %c0_i32, %c0_i32_0 : i32, i32
  }
  func.func @transform_5(%arg0: i32) -> (i32, i32) {
    %c0_i32 = arith.constant 0 : i32
    %c0_i32_0 = arith.constant 0 : i32
    %c0_i32_1 = arith.constant 0 : i32
    return %c0_i32, %c0_i32_0 : i32, i32
  }
  func.func @transform_6(%arg0: i32) -> (i32, i32) {
    %c0_i32 = arith.constant 0 : i32
    %c0_i32_0 = arith.constant 0 : i32
    return %arg0, %c0_i32 : i32, i32
  }
  func.func @transform_7(%arg0: i32) -> (i32, i32) {
    %c0_i32 = arith.constant 0 : i32
    %c0_i32_0 = arith.constant 0 : i32
    return %arg0, %c0_i32 : i32, i32
  }
}

</mosaic_0001>

<llo_original>
// kernel: tpu_custom_call.1
$region0: #{tpu_custom_call.1}
  #allocation0 [shape = 'u32[]', space=smem, size = 0x4, offset = 0x4, fixed_abs, tag = 'smem constant byte address 0x4 - core index']
  #allocation1 [shape = 'u32[144,128]{1,0:T(1,128)}', space=vmem, size = 0x12000, scoped, tag = 'internal scratch']
  %s0 = inlined_call_operand.vmem [shape: s32[256,2], index: 0, kind: input, shape index: {}]
  %s1 = inlined_call_operand.vmem [shape: bf16[64,128], index: 1, kind: input, shape index: {}]
  %s2 = inlined_call_operand.vmem [shape: bf16[128,128], index: 2, kind: input, shape index: {}]
  %s3 = inlined_call_operand.vmem [shape: f32[1,128], index: 3, kind: input, shape index: {}]
  %s4 = inlined_call_operand.vmem [shape: bf16[128,128], index: 4, kind: input, shape index: {}]
  %s5 = inlined_call_operand.vmem [shape: f32[1,128], index: 5, kind: input, shape index: {}]
  %s6 = inlined_call_operand.hbm [shape: f32[256,128], index: 6, kind: output, shape index: {0}]
  %s7 = inlined_call_operand.hbm [shape: f32[256,128], index: 7, kind: output, shape index: {1}]
  %8 = xla_tuple %s6, %s7
  %s9 = sld [smem:[#allocation0]]
  $region42: #{tpu_custom_call.1} parent=0
    _
  %s11 = ssub.s32 1, %s9
  %s12 = scalar_select 0, %s11, %s9
  $region1: #{tpu_custom_call.1} parent=0
    #allocation2 [shape = 'u8[131072]{0}', space=vmem, size = 0x20000, scoped, tag = 'output window, operand 0, single buffered']
    #allocation3 [shape = 's32[1]{0}', space=sflag, size = 0x4, scoped, tag = 'scoped memory for tpu_custom_call.1']
    #allocation4 [shape = 'u8[131072]{0}', space=vmem, size = 0x20000, scoped, tag = 'output window, operand 1, single buffered']
    #allocation5 [shape = 's32[1]{0}', space=sflag, size = 0x4, scoped, tag = 'scoped memory for tpu_custom_call.1']
    %13 = vsyncpa [#allocation3], 0
    %14 = vsyncpa [#allocation5], 0
    // Predicated region
    $region2: #{tpu_custom_call.1} parent=1 // pred_check
      _
    $region3: #{tpu_custom_call.1} parent=1 // pred_check_branch
      %16 = sbr.rel (0) target = $region5
    $region4: #{tpu_custom_call.1} parent=1 // pred_region
      _
    $region5: #{tpu_custom_call.1} parent=1 // pred_fallthru
      _
    // Predicated region
    $region6: #{tpu_custom_call.1} parent=1 // pred_check
      _
    $region7: #{tpu_custom_call.1} parent=1 // pred_check_branch
      %18 = sbr.rel (0) target = $region9
    $region8: #{tpu_custom_call.1} parent=1 // pred_region
      _
    $region9: #{tpu_custom_call.1} parent=1 // pred_fallthru
      _
    // Predicated region
    $region10: #{tpu_custom_call.1} parent=1 // pred_check
      _
    $region11: #{tpu_custom_call.1} parent=1 // pred_check_branch
      %20 = sbr.rel (0) target = $region13
    $region12: #{tpu_custom_call.1} parent=1 // pred_region
      _
    $region13: #{tpu_custom_call.1} parent=1 // pred_fallthru
      _
    // Predicated region
    $region14: #{tpu_custom_call.1} parent=1 // pred_check
      _
    $region15: #{tpu_custom_call.1} parent=1 // pred_check_branch
      %22 = sbr.rel (0) target = $region17
    $region16: #{tpu_custom_call.1} parent=1 // pred_region
      _
    $region17: #{tpu_custom_call.1} parent=1 // pred_fallthru
      _
    // Predicated region
    $region18: #{tpu_custom_call.1} parent=1 // pred_check
      _
    $region19: #{tpu_custom_call.1} parent=1 // pred_check_branch
      %24 = sbr.rel (0) target = $region21
    $region20: #{tpu_custom_call.1} parent=1 // pred_region
      _
    $region21: #{tpu_custom_call.1} parent=1 // pred_fallthru
      _
    // Predicated region
    $region22: #{tpu_custom_call.1} parent=1 // pred_check
      _
    $region23: #{tpu_custom_call.1} parent=1 // pred_check_branch
      %26 = sbr.rel (0) target = $region25
    $region24: #{tpu_custom_call.1} parent=1 // pred_region
      _
    $region25: #{tpu_custom_call.1} parent=1 // pred_fallthru
      _
    %v28 = vld [vmem:[%s0] sm:$0xff]
    %v29 = vld [vmem:[%s0 + $0x8] sm:$0xff]
    %v30 = vld [vmem:[%s0 + $0x10] sm:$0xff]
    %v31 = vld [vmem:[%s0 + $0x18] sm:$0xff]
    %v32 = vld [vmem:[%s0 + $0x20] sm:$0xff]
    %v33 = vld [vmem:[%s0 + $0x28] sm:$0xff]
    %v34 = vld [vmem:[%s0 + $0x30] sm:$0xff]
    %v35 = vld [vmem:[%s0 + $0x38] sm:$0xff]
    %v36 = vld [vmem:[%s0 + $0x40] sm:$0xff]
    %v37 = vld [vmem:[%s0 + $0x48] sm:$0xff]
    %v38 = vld [vmem:[%s0 + $0x50] sm:$0xff]
    %v39 = vld [vmem:[%s0 + $0x58] sm:$0xff]
    %v40 = vld [vmem:[%s0 + $0x60] sm:$0xff]
    %v41 = vld [vmem:[%s0 + $0x68] sm:$0xff]
    %v42 = vld [vmem:[%s0 + $0x70] sm:$0xff]
    %v43 = vld [vmem:[%s0 + $0x78] sm:$0xff]
    %v44 = vld [vmem:[%s0 + $0x80] sm:$0xff]
    %v45 = vld [vmem:[%s0 + $0x88] sm:$0xff]
    %v46 = vld [vmem:[%s0 + $0x90] sm:$0xff]
    %v47 = vld [vmem:[%s0 + $0x98] sm:$0xff]
    %v48 = vld [vmem:[%s0 + $0xa0] sm:$0xff]
    %v49 = vld [vmem:[%s0 + $0xa8] sm:$0xff]
    %v50 = vld [vmem:[%s0 + $0xb0] sm:$0xff]
    %v51 = vld [vmem:[%s0 + $0xb8] sm:$0xff]
    %v52 = vld [vmem:[%s0 + $0xc0] sm:$0xff]
    %v53 = vld [vmem:[%s0 + $0xc8] sm:$0xff]
    %v54 = vld [vmem:[%s0 + $0xd0] sm:$0xff]
    %v55 = vld [vmem:[%s0 + $0xd8] sm:$0xff]
    %v56 = vld [vmem:[%s0 + $0xe0] sm:$0xff]
    %v57 = vld [vmem:[%s0 + $0xe8] sm:$0xff]
    %v58 = vld [vmem:[%s0 + $0xf0] sm:$0xff]
    %v59 = vld [vmem:[%s0 + $0xf8] sm:$0xff]
    %v60 = vcvt.s32.f32 %v28
    %v61 = vcvt.s32.f32 %v29
    %v62 = vcvt.s32.f32 %v30
    %v63 = vcvt.s32.f32 %v31
    %v64 = vcvt.s32.f32 %v32
    %v65 = vcvt.s32.f32 %v33
    %v66 = vcvt.s32.f32 %v34
    %v67 = vcvt.s32.f32 %v35
    %v68 = vcvt.s32.f32 %v36
    %v69 = vcvt.s32.f32 %v37
    %v70 = vcvt.s32.f32 %v38
    %v71 = vcvt.s32.f32 %v39
    %v72 = vcvt.s32.f32 %v40
    %v73 = vcvt.s32.f32 %v41
    %v74 = vcvt.s32.f32 %v42
    %v75 = vcvt.s32.f32 %v43
    %v76 = vcvt.s32.f32 %v44
    %v77 = vcvt.s32.f32 %v45
    %v78 = vcvt.s32.f32 %v46
    %v79 = vcvt.s32.f32 %v47
    %v80 = vcvt.s32.f32 %v48
    %v81 = vcvt.s32.f32 %v49
    %v82 = vcvt.s32.f32 %v50
    %v83 = vcvt.s32.f32 %v51
    %v84 = vcvt.s32.f32 %v52
    %v85 = vcvt.s32.f32 %v53
    %v86 = vcvt.s32.f32 %v54
    %v87 = vcvt.s32.f32 %v55
    %v88 = vcvt.s32.f32 %v56
    %v89 = vcvt.s32.f32 %v57
    %v90 = vcvt.s32.f32 %v58
    %v91 = vcvt.s32.f32 %v59
    %v92 = vlaneseq
    %v93 = vand.u32 %v92, 127
    %94 = vset.pattern.permute.xlu0 0
    %95 = vperm.xlu0 %94, %v28
    %v96 = vpop.permute.xlu0 %95
    %97 = vset.pattern.permute.xlu0 0
    %98 = vperm.xlu0 %97, %v29
    %v99 = vpop.permute.xlu0 %98
    %100 = vset.pattern.permute.xlu0 0
    %101 = vperm.xlu0 %100, %v30
    %v102 = vpop.permute.xlu0 %101
    %103 = vset.pattern.permute.xlu0 0
    %104 = vperm.xlu0 %103, %v31
    %v105 = vpop.permute.xlu0 %104
    %106 = vset.pattern.permute.xlu0 0
    %107 = vperm.xlu0 %106, %v32
    %v108 = vpop.permute.xlu0 %107
    %109 = vset.pattern.permute.xlu0 0
    %110 = vperm.xlu0 %109, %v33
    %v111 = vpop.permute.xlu0 %110
    %112 = vset.pattern.permute.xlu0 0
    %113 = vperm.xlu0 %112, %v34
    %v114 = vpop.permute.xlu0 %113
    %115 = vset.pattern.permute.xlu0 0
    %116 = vperm.xlu0 %115, %v35
    %v117 = vpop.permute.xlu0 %116
    %118 = vset.pattern.permute.xlu0 0
    %119 = vperm.xlu0 %118, %v36
    %v120 = vpop.permute.xlu0 %119
    %121 = vset.pattern.permute.xlu0 0
    %122 = vperm.xlu0 %121, %v37
    %v123 = vpop.permute.xlu0 %122
    %124 = vset.pattern.permute.xlu0 0
    %125 = vperm.xlu0 %124, %v38
    %v126 = vpop.permute.xlu0 %125
    %127 = vset.pattern.permute.xlu0 0
    %128 = vperm.xlu0 %127, %v39
    %v129 = vpop.permute.xlu0 %128
    %130 = vset.pattern.permute.xlu0 0
    %131 = vperm.xlu0 %130, %v40
    %v132 = vpop.permute.xlu0 %131
    %133 = vset.pattern.permute.xlu0 0
    %134 = vperm.xlu0 %133, %v41
    %v135 = vpop.permute.xlu0 %134
    %136 = vset.pattern.permute.xlu0 0
    %137 = vperm.xlu0 %136, %v42
    %v138 = vpop.permute.xlu0 %137
    %139 = vset.pattern.permute.xlu0 0
    %140 = vperm.xlu0 %139, %v43
    %v141 = vpop.permute.xlu0 %140
    %142 = vset.pattern.permute.xlu0 0
    %143 = vperm.xlu0 %142, %v44
    %v144 = vpop.permute.xlu0 %143
    %145 = vset.pattern.permute.xlu0 0
    %146 = vperm.xlu0 %145, %v45
    %v147 = vpop.permute.xlu0 %146
    %148 = vset.pattern.permute.xlu0 0
    %149 = vperm.xlu0 %148, %v46
    %v150 = vpop.permute.xlu0 %149
    %151 = vset.pattern.permute.xlu0 0
    %152 = vperm.xlu0 %151, %v47
    %v153 = vpop.permute.xlu0 %152
    %154 = vset.pattern.permute.xlu0 0
    %155 = vperm.xlu0 %154, %v48
    %v156 = vpop.permute.xlu0 %155
    %157 = vset.pattern.permute.xlu0 0
    %158 = vperm.xlu0 %157, %v49
    %v159 = vpop.permute.xlu0 %158
    %160 = vset.pattern.permute.xlu0 0
    %161 = vperm.xlu0 %160, %v50
    %v162 = vpop.permute.xlu0 %161
    %163 = vset.pattern.permute.xlu0 0
    %164 = vperm.xlu0 %163, %v51
    %v165 = vpop.permute.xlu0 %164
    %166 = vset.pattern.permute.xlu0 0
    %167 = vperm.xlu0 %166, %v52
    %v168 = vpop.permute.xlu0 %167
    %169 = vset.pattern.permute.xlu0 0
    %170 = vperm.xlu0 %169, %v53
    %v171 = vpop.permute.xlu0 %170
    %172 = vset.pattern.permute.xlu0 0
    %173 = vperm.xlu0 %172, %v54
    %v174 = vpop.permute.xlu0 %173
    %175 = vset.pattern.permute.xlu0 0
    %176 = vperm.xlu0 %175, %v55
    %v177 = vpop.permute.xlu0 %176
    %178 = vset.pattern.permute.xlu0 0
    %179 = vperm.xlu0 %178, %v56
    %v180 = vpop.permute.xlu0 %179
    %181 = vset.pattern.permute.xlu0 0
    %182 = vperm.xlu0 %181, %v57
    %v183 = vpop.permute.xlu0 %182
    %184 = vset.pattern.permute.xlu0 0
    %185 = vperm.xlu0 %184, %v58
    %v186 = vpop.permute.xlu0 %185
    %187 = vset.pattern.permute.xlu0 0
    %188 = vperm.xlu0 %187, %v59
    %v189 = vpop.permute.xlu0 %188
    %vm190 = vcmp.eq.s32.totalorder %v96, %v93
    %vm191 = vcmp.eq.s32.totalorder %v99, %v93
    %vm192 = vcmp.eq.s32.totalorder %v102, %v93
    %vm193 = vcmp.eq.s32.totalorder %v105, %v93
    %vm194 = vcmp.eq.s32.totalorder %v108, %v93
    %vm195 = vcmp.eq.s32.totalorder %v111, %v93
    %vm196 = vcmp.eq.s32.totalorder %v114, %v93
    %vm197 = vcmp.eq.s32.totalorder %v117, %v93
    %vm198 = vcmp.eq.s32.totalorder %v120, %v93
    %vm199 = vcmp.eq.s32.totalorder %v123, %v93
    %vm200 = vcmp.eq.s32.totalorder %v126, %v93
    %vm201 = vcmp.eq.s32.totalorder %v129, %v93
    %vm202 = vcmp.eq.s32.totalorder %v132, %v93
    %vm203 = vcmp.eq.s32.totalorder %v135, %v93
    %vm204 = vcmp.eq.s32.totalorder %v138, %v93
    %vm205 = vcmp.eq.s32.totalorder %v141, %v93
    %vm206 = vcmp.eq.s32.totalorder %v144, %v93
    %vm207 = vcmp.eq.s32.totalorder %v147, %v93
    %vm208 = vcmp.eq.s32.totalorder %v150, %v93
    %vm209 = vcmp.eq.s32.totalorder %v153, %v93
    %vm210 = vcmp.eq.s32.totalorder %v156, %v93
    %vm211 = vcmp.eq.s32.totalorder %v159, %v93
    %vm212 = vcmp.eq.s32.totalorder %v162, %v93
    %vm213 = vcmp.eq.s32.totalorder %v165, %v93
    %vm214 = vcmp.eq.s32.totalorder %v168, %v93
    %vm215 = vcmp.eq.s32.totalorder %v171, %v93
    %vm216 = vcmp.eq.s32.totalorder %v174, %v93
    %vm217 = vcmp.eq.s32.totalorder %v177, %v93
    %vm218 = vcmp.eq.s32.totalorder %v180, %v93
    %vm219 = vcmp.eq.s32.totalorder %v183, %v93
    %vm220 = vcmp.eq.s32.totalorder %v186, %v93
    %vm221 = vcmp.eq.s32.totalorder %v189, %v93
    %v222 = vsel %vm190, 1, 0
    %v223 = vsel %vm191, 1, 0
    %v224 = vsel %vm192, 1, 0
    %v225 = vsel %vm193, 1, 0
    %v226 = vsel %vm194, 1, 0
    %v227 = vsel %vm195, 1, 0
    %v228 = vsel %vm196, 1, 0
    %v229 = vsel %vm197, 1, 0
    %v230 = vsel %vm198, 1, 0
    %v231 = vsel %vm199, 1, 0
    %v232 = vsel %vm200, 1, 0
    %v233 = vsel %vm201, 1, 0
    %v234 = vsel %vm202, 1, 0
    %v235 = vsel %vm203, 1, 0
    %v236 = vsel %vm204, 1, 0
    %v237 = vsel %vm205, 1, 0
    %v238 = vsel %vm206, 1, 0
    %v239 = vsel %vm207, 1, 0
    %v240 = vsel %vm208, 1, 0
    %v241 = vsel %vm209, 1, 0
    %v242 = vsel %vm210, 1, 0
    %v243 = vsel %vm211, 1, 0
    %v244 = vsel %vm212, 1, 0
    %v245 = vsel %vm213, 1, 0
    %v246 = vsel %vm214, 1, 0
    %v247 = vsel %vm215, 1, 0
    %v248 = vsel %vm216, 1, 0
    %v249 = vsel %vm217, 1, 0
    %v250 = vsel %vm218, 1, 0
    %v251 = vsel %vm219, 1, 0
    %v252 = vsel %vm220, 1, 0
    %v253 = vsel %vm221, 1, 0
    %v254 = vcvt.s32.f32 %v222
    %v255 = vcvt.s32.f32 %v223
    %v256 = vcvt.s32.f32 %v224
    %v257 = vcvt.s32.f32 %v225
    %v258 = vcvt.s32.f32 %v226
    %v259 = vcvt.s32.f32 %v227
    %v260 = vcvt.s32.f32 %v228
    %v261 = vcvt.s32.f32 %v229
    %v262 = vcvt.s32.f32 %v230
    %v263 = vcvt.s32.f32 %v231
    %v264 = vcvt.s32.f32 %v232
    %v265 = vcvt.s32.f32 %v233
    %v266 = vcvt.s32.f32 %v234
    %v267 = vcvt.s32.f32 %v235
    %v268 = vcvt.s32.f32 %v236
    %v269 = vcvt.s32.f32 %v237
    %v270 = vcvt.s32.f32 %v238
    %v271 = vcvt.s32.f32 %v239
    %v272 = vcvt.s32.f32 %v240
    %v273 = vcvt.s32.f32 %v241
    %v274 = vcvt.s32.f32 %v242
    %v275 = vcvt.s32.f32 %v243
    %v276 = vcvt.s32.f32 %v244
    %v277 = vcvt.s32.f32 %v245
    %v278 = vcvt.s32.f32 %v246
    %v279 = vcvt.s32.f32 %v247
    %v280 = vcvt.s32.f32 %v248
    %v281 = vcvt.s32.f32 %v249
    %v282 = vcvt.s32.f32 %v250
    %v283 = vcvt.s32.f32 %v251
    %v284 = vcvt.s32.f32 %v252
    %v285 = vcvt.s32.f32 %v253
    %v286 = vpack.c.bf16 %v255, %v254
    %v287 = vpack.c.bf16 %v257, %v256
    %v288 = vpack.c.bf16 %v259, %v258
    %v289 = vpack.c.bf16 %v261, %v260
    %v290 = vpack.c.bf16 %v263, %v262
    %v291 = vpack.c.bf16 %v265, %v264
    %v292 = vpack.c.bf16 %v267, %v266
    %v293 = vpack.c.bf16 %v269, %v268
    %v294 = vpack.c.bf16 %v271, %v270
    %v295 = vpack.c.bf16 %v273, %v272
    %v296 = vpack.c.bf16 %v275, %v274
    %v297 = vpack.c.bf16 %v277, %v276
    %v298 = vpack.c.bf16 %v279, %v278
    %v299 = vpack.c.bf16 %v281, %v280
    %v300 = vpack.c.bf16 %v283, %v282
    %v301 = vpack.c.bf16 %v285, %v284
    %v302 = vld [vmem:[%s1] sm:$0xf]
    %v303 = vld [vmem:[%s1 + $0x4] sm:$0xf]
    %v304 = vld [vmem:[%s1 + $0x8] sm:$0xf]
    %v305 = vld [vmem:[%s1 + $0xc] sm:$0xf]
    %v306 = vld [vmem:[%s1 + $0x10] sm:$0xf]
    %v307 = vld [vmem:[%s1 + $0x14] sm:$0xf]
    %v308 = vld [vmem:[%s1 + $0x18] sm:$0xf]
    %v309 = vld [vmem:[%s1 + $0x1c] sm:$0xf]
    %v318 = vunpack.c.l.b16 %v302
    %v319 = vunpack.c.l.b16 %v303
    %v320 = vunpack.c.l.b16 %v304
    %v321 = vunpack.c.l.b16 %v305
    %v322 = vunpack.c.l.b16 %v306
    %v323 = vunpack.c.l.b16 %v307
    %v324 = vunpack.c.l.b16 %v308
    %v325 = vunpack.c.l.b16 %v309
    %v326 = vpack.c.b16 %v319, %v318
    %v327 = vpack.c.b16 %v321, %v320
    %v328 = vpack.c.b16 %v323, %v322
    %v329 = vpack.c.b16 %v325, %v324
    %vm334 = vcmask 523264
    %v336 = vsel %vm334, %v286, 0
    %v339 = vsel %vm334, %v287, 0
    %v342 = vsel %vm334, %v288, 0
    %v345 = vsel %vm334, %v289, 0
    %v348 = vsel %vm334, %v290, 0
    %v351 = vsel %vm334, %v291, 0
    %v354 = vsel %vm334, %v292, 0
    %v357 = vsel %vm334, %v293, 0
    %v360 = vsel %vm334, %v294, 0
    %v363 = vsel %vm334, %v295, 0
    %v366 = vsel %vm334, %v296, 0
    %v369 = vsel %vm334, %v297, 0
    %v372 = vsel %vm334, %v298, 0
    %v375 = vsel %vm334, %v299, 0
    %v378 = vsel %vm334, %v300, 0
    %v381 = vsel %vm334, %v301, 0
    %383 = vmatprep.subr.bf16.mxu0 0
    %384 = vmatpush1.bf16.msra.mxu0 %v326
    %385 = vmatprep.subr.bf16.mxu0 0
    %386 = vmatpush1.bf16.msra.mxu0 %v327
    %387 = vmatprep.subr.bf16.mxu0 0
    %388 = vmatpush1.bf16.msra.mxu0 %v328
    %389 = vmatprep.subr.bf16.mxu0 0
    %390 = vmatpush1.bf16.msra.mxu0 %v329
    %391 = vmatprep.subr.bf16.mxu0 0
    %392 = vmatpush1.bf16.msra.mxu0 0
    %393 = vmatprep.subr.bf16.mxu0 0
    %394 = vmatpush1.bf16.msra.mxu0 0
    %395 = vmatprep.subr.bf16.mxu0 0
    %396 = vmatpush1.bf16.msra.mxu0 0
    %397 = vmatprep.subr.bf16.mxu0 0
    %398 = vmatpush1.bf16.msra.mxu0 0
    %399 = vmatprep.subr.bf16.mxu0 0
    %400 = vmatpush1.bf16.msra.mxu0 0
    %401 = vmatprep.subr.bf16.mxu0 0
    %402 = vmatpush1.bf16.msra.mxu0 0
    %403 = vmatprep.subr.bf16.mxu0 0
    %404 = vmatpush1.bf16.msra.mxu0 0
    %405 = vmatprep.subr.bf16.mxu0 0
    %406 = vmatpush1.bf16.msra.mxu0 0
    %407 = vmatprep.subr.bf16.mxu0 0
    %408 = vmatpush1.bf16.msra.mxu0 0
    %409 = vmatprep.subr.bf16.mxu0 0
    %410 = vmatpush1.bf16.msra.mxu0 0
    %411 = vmatprep.subr.bf16.mxu0 0
    %412 = vmatpush1.bf16.msra.mxu0 0
    %413 = vmatprep.subr.bf16.mxu0 0
    %414 = vmatpush1.bf16.msra.mxu0 0
    %415 = vmatprep.mubr.bf16.mxu0 0
    %416 = vmatmul.mubr.bf16.gmra.mrb[0].mxu0 %v336
    %v417 = vpop.f32.mrb[0].mxu0
    %v418 = vadd.f32 0.0, %v417
    %v419 = vpop.f32.mrb[0].mxu0
    %v420 = vpop.f32.mrb[0].mxu0
    %v421 = vadd.f32 0.0, %v420
    %v422 = vpop.f32.mrb[0].mxu0
    %423 = vmatprep.mubr.bf16.mxu0 0
    %424 = vmatmul.mubr.bf16.gmra.mrb[0].mxu0 %v339
    %v425 = vpop.f32.mrb[0].mxu0
    %v426 = vadd.f32 0.0, %v425
    %v427 = vpop.f32.mrb[0].mxu0
    %v428 = vpop.f32.mrb[0].mxu0
    %v429 = vadd.f32 0.0, %v428
    %v430 = vpop.f32.mrb[0].mxu0
    %431 = vmatprep.mubr.bf16.mxu0 0
    %432 = vmatmul.mubr.bf16.gmra.mrb[0].mxu0 %v342
    %v433 = vpop.f32.mrb[0].mxu0
    %v434 = vadd.f32 0.0, %v433
    %v435 = vpop.f32.mrb[0].mxu0
    %v436 = vpop.f32.mrb[0].mxu0
    %v437 = vadd.f32 0.0, %v436
    %v438 = vpop.f32.mrb[0].mxu0
    %439 = vmatprep.mubr.bf16.mxu0 0
    %440 = vmatmul.mubr.bf16.gmra.mrb[0].mxu0 %v345
    %v441 = vpop.f32.mrb[0].mxu0
    %v442 = vadd.f32 0.0, %v441
    %v443 = vpop.f32.mrb[0].mxu0
    %v444 = vpop.f32.mrb[0].mxu0
    %v445 = vadd.f32 0.0, %v444
    %v446 = vpop.f32.mrb[0].mxu0
    %447 = vmatprep.mubr.bf16.mxu0 0
    %448 = vmatmul.mubr.bf16.gmra.mrb[0].mxu0 %v348
    %v449 = vpop.f32.mrb[0].mxu0
    %v450 = vadd.f32 0.0, %v449
    %v451 = vpop.f32.mrb[0].mxu0
    %v452 = vpop.f32.mrb[0].mxu0
    %v453 = vadd.f32 0.0, %v452
    %v454 = vpop.f32.mrb[0].mxu0
    %455 = vmatprep.mubr.bf16.mxu0 0
    %456 = vmatmul.mubr.bf16.gmra.mrb[0].mxu0 %v351
    %v457 = vpop.f32.mrb[0].mxu0
    %v458 = vadd.f32 0.0, %v457
    %v459 = vpop.f32.mrb[0].mxu0
    %v460 = vpop.f32.mrb[0].mxu0
    %v461 = vadd.f32 0.0, %v460
    %v462 = vpop.f32.mrb[0].mxu0
    %463 = vmatprep.mubr.bf16.mxu0 0
    %464 = vmatmul.mubr.bf16.gmra.mrb[0].mxu0 %v354
    %v465 = vpop.f32.mrb[0].mxu0
    %v466 = vadd.f32 0.0, %v465
    %v467 = vpop.f32.mrb[0].mxu0
    %v468 = vpop.f32.mrb[0].mxu0
    %v469 = vadd.f32 0.0, %v468
    %v470 = vpop.f32.mrb[0].mxu0
    %471 = vmatprep.mubr.bf16.mxu0 0
    %472 = vmatmul.mubr.bf16.gmra.mrb[0].mxu0 %v357
    %v473 = vpop.f32.mrb[0].mxu0
    %v474 = vadd.f32 0.0, %v473
    %v475 = vpop.f32.mrb[0].mxu0
    %v476 = vpop.f32.mrb[0].mxu0
    %v477 = vadd.f32 0.0, %v476
    %v478 = vpop.f32.mrb[0].mxu0
    %479 = vmatprep.mubr.bf16.mxu0 0
    %480 = vmatmul.mubr.bf16.gmra.mrb[0].mxu0 %v360
    %v481 = vpop.f32.mrb[0].mxu0
    %v482 = vadd.f32 0.0, %v481
    %v483 = vpop.f32.mrb[0].mxu0
    %v484 = vpop.f32.mrb[0].mxu0
    %v485 = vadd.f32 0.0, %v484
    %v486 = vpop.f32.mrb[0].mxu0
    %487 = vmatprep.mubr.bf16.mxu0 0
    %488 = vmatmul.mubr.bf16.gmra.mrb[0].mxu0 %v363
    %v489 = vpop.f32.mrb[0].mxu0
    %v490 = vadd.f32 0.0, %v489
    %v491 = vpop.f32.mrb[0].mxu0
    %v492 = vpop.f32.mrb[0].mxu0
    %v493 = vadd.f32 0.0, %v492
    %v494 = vpop.f32.mrb[0].mxu0
    %495 = vmatprep.mubr.bf16.mxu0 0
    %496 = vmatmul.mubr.bf16.gmra.mrb[0].mxu0 %v366
    %v497 = vpop.f32.mrb[0].mxu0
    %v498 = vadd.f32 0.0, %v497
    %v499 = vpop.f32.mrb[0].mxu0
    %v500 = vpop.f32.mrb[0].mxu0
    %v501 = vadd.f32 0.0, %v500
    %v502 = vpop.f32.mrb[0].mxu0
    %503 = vmatprep.mubr.bf16.mxu0 0
    %504 = vmatmul.mubr.bf16.gmra.mrb[0].mxu0 %v369
    %v505 = vpop.f32.mrb[0].mxu0
    %v506 = vadd.f32 0.0, %v505
    %v507 = vpop.f32.mrb[0].mxu0
    %v508 = vpop.f32.mrb[0].mxu0
    %v509 = vadd.f32 0.0, %v508
    %v510 = vpop.f32.mrb[0].mxu0
    %511 = vmatprep.mubr.bf16.mxu0 0
    %512 = vmatmul.mubr.bf16.gmra.mrb[0].mxu0 %v372
    %v513 = vpop.f32.mrb[0].mxu0
    %v514 = vadd.f32 0.0, %v513
    %v515 = vpop.f32.mrb[0].mxu0
    %v516 = vpop.f32.mrb[0].mxu0
    %v517 = vadd.f32 0.0, %v516
    %v518 = vpop.f32.mrb[0].mxu0
    %519 = vmatprep.mubr.bf16.mxu0 0
    %520 = vmatmul.mubr.bf16.gmra.mrb[0].mxu0 %v375
    %v521 = vpop.f32.mrb[0].mxu0
    %v522 = vadd.f32 0.0, %v521
    %v523 = vpop.f32.mrb[0].mxu0
    %v524 = vpop.f32.mrb[0].mxu0
    %v525 = vadd.f32 0.0, %v524
    %v526 = vpop.f32.mrb[0].mxu0
    %527 = vmatprep.mubr.bf16.mxu0 0
    %528 = vmatmul.mubr.bf16.gmra.mrb[0].mxu0 %v378
    %v529 = vpop.f32.mrb[0].mxu0
    %v530 = vadd.f32 0.0, %v529
    %v531 = vpop.f32.mrb[0].mxu0
    %v532 = vpop.f32.mrb[0].mxu0
    %v533 = vadd.f32 0.0, %v532
    %v534 = vpop.f32.mrb[0].mxu0
    %535 = vmatprep.mubr.bf16.mxu0 0
    %536 = vmatmul.mubr.bf16.gmra.mrb[0].mxu0 %v381
    %v537 = vpop.f32.mrb[0].mxu0
    %v538 = vadd.f32 0.0, %v537
    %v539 = vpop.f32.mrb[0].mxu0
    %v540 = vpop.f32.mrb[0].mxu0
    %v541 = vadd.f32 0.0, %v540
    %v542 = vpop.f32.mrb[0].mxu0
    %543 = vdwg.mxu0
    %v544 = vpack.c.bf16 %v421, %v418
    %v545 = vpack.c.bf16 %v429, %v426
    %v546 = vpack.c.bf16 %v437, %v434
    %v547 = vpack.c.bf16 %v445, %v442
    %v548 = vpack.c.bf16 %v453, %v450
    %v549 = vpack.c.bf16 %v461, %v458
    %v550 = vpack.c.bf16 %v469, %v466
    %v551 = vpack.c.bf16 %v477, %v474
    %v552 = vpack.c.bf16 %v485, %v482
    %v553 = vpack.c.bf16 %v493, %v490
    %v554 = vpack.c.bf16 %v501, %v498
    %v555 = vpack.c.bf16 %v509, %v506
    %v556 = vpack.c.bf16 %v517, %v514
    %v557 = vpack.c.bf16 %v525, %v522
    %v558 = vpack.c.bf16 %v533, %v530
    %v559 = vpack.c.bf16 %v541, %v538
    %v560 = vld [vmem:[%s2] sm:$0xf]
    %v561 = vld [vmem:[%s2 + $0x4] sm:$0xf]
    %v562 = vld [vmem:[%s2 + $0x8] sm:$0xf]
    %v563 = vld [vmem:[%s2 + $0xc] sm:$0xf]
    %v564 = vld [vmem:[%s2 + $0x10] sm:$0xf]
    %v565 = vld [vmem:[%s2 + $0x14] sm:$0xf]
    %v566 = vld [vmem:[%s2 + $0x18] sm:$0xf]
    %v567 = vld [vmem:[%s2 + $0x1c] sm:$0xf]
    %v568 = vld [vmem:[%s2 + $0x20] sm:$0xf]
    %v569 = vld [vmem:[%s2 + $0x24] sm:$0xf]
    %v570 = vld [vmem:[%s2 + $0x28] sm:$0xf]
    %v571 = vld [vmem:[%s2 + $0x2c] sm:$0xf]
    %v572 = vld [vmem:[%s2 + $0x30] sm:$0xf]
    %v573 = vld [vmem:[%s2 + $0x34] sm:$0xf]
    %v574 = vld [vmem:[%s2 + $0x38] sm:$0xf]
    %v575 = vld [vmem:[%s2 + $0x3c] sm:$0xf]
    %v576 = vld [vmem:[%s3] sm:$0x1]
    %v578 = vlaneseq
    %v579 = vshrl.u32 %v578, 7
    %v580 = vsub.s32 0, %v579
    %v581 = vrot.slane %v576, %v580
    %v599 = vunpack.c.l.b16 %v560
    %v600 = vunpack.c.l.b16 %v561
    %v601 = vunpack.c.l.b16 %v562
    %v602 = vunpack.c.l.b16 %v563
    %v603 = vunpack.c.l.b16 %v564
    %v604 = vunpack.c.l.b16 %v565
    %v605 = vunpack.c.l.b16 %v566
    %v606 = vunpack.c.l.b16 %v567
    %v607 = vunpack.c.l.b16 %v568
    %v608 = vunpack.c.l.b16 %v569
    %v609 = vunpack.c.l.b16 %v570
    %v610 = vunpack.c.l.b16 %v571
    %v611 = vunpack.c.l.b16 %v572
    %v612 = vunpack.c.l.b16 %v573
    %v613 = vunpack.c.l.b16 %v574
    %v614 = vunpack.c.l.b16 %v575
    %v615 = vpack.c.b16 %v600, %v599
    %v616 = vpack.c.b16 %v602, %v601
    %v617 = vpack.c.b16 %v604, %v603
    %v618 = vpack.c.b16 %v606, %v605
    %v619 = vpack.c.b16 %v608, %v607
    %v620 = vpack.c.b16 %v610, %v609
    %v621 = vpack.c.b16 %v612, %v611
    %v622 = vpack.c.b16 %v614, %v613
    %631 = vmatprep.subr.bf16.mxu0 0
    %632 = vmatpush1.bf16.msra.mxu0 %v615
    %633 = vmatprep.subr.bf16.mxu0 0
    %634 = vmatpush1.bf16.msra.mxu0 %v616
    %635 = vmatprep.subr.bf16.mxu0 0
    %636 = vmatpush1.bf16.msra.mxu0 %v617
    %637 = vmatprep.subr.bf16.mxu0 0
    %638 = vmatpush1.bf16.msra.mxu0 %v618
    %639 = vmatprep.subr.bf16.mxu0 0
    %640 = vmatpush1.bf16.msra.mxu0 %v619
    %641 = vmatprep.subr.bf16.mxu0 0
    %642 = vmatpush1.bf16.msra.mxu0 %v620
    %643 = vmatprep.subr.bf16.mxu0 0
    %644 = vmatpush1.bf16.msra.mxu0 %v621
    %645 = vmatprep.subr.bf16.mxu0 0
    %646 = vmatpush1.bf16.msra.mxu0 %v622
    %647 = vmatprep.subr.bf16.mxu0 0
    %648 = vmatpush1.bf16.msra.mxu0 0
    %649 = vmatprep.subr.bf16.mxu0 0
    %650 = vmatpush1.bf16.msra.mxu0 0
    %651 = vmatprep.subr.bf16.mxu0 0
    %652 = vmatpush1.bf16.msra.mxu0 0
    %653 = vmatprep.subr.bf16.mxu0 0
    %654 = vmatpush1.bf16.msra.mxu0 0
    %655 = vmatprep.subr.bf16.mxu0 0
    %656 = vmatpush1.bf16.msra.mxu0 0
    %657 = vmatprep.subr.bf16.mxu0 0
    %658 = vmatpush1.bf16.msra.mxu0 0
    %659 = vmatprep.subr.bf16.mxu0 0
    %660 = vmatpush1.bf16.msra.mxu0 0
    %661 = vmatprep.subr.bf16.mxu0 0
    %662 = vmatpush1.bf16.msra.mxu0 0
    %663 = vmatprep.mubr.bf16.mxu0 0
    %664 = vmatmul.mubr.bf16.gmra.mrb[0].mxu0 %v544
    %v665 = vpop.f32.mrb[0].mxu0
    %v666 = vadd.f32 %v581, %v665
    %v667 = vpop.f32.mrb[0].mxu0
    %v668 = vpop.f32.mrb[0].mxu0
    %v669 = vadd.f32 %v581, %v668
    %v670 = vpop.f32.mrb[0].mxu0
    %671 = vmatprep.mubr.bf16.mxu0 0
    %672 = vmatmul.mubr.bf16.gmra.mrb[0].mxu0 %v545
    %v673 = vpop.f32.mrb[0].mxu0
    %v674 = vadd.f32 %v581, %v673
    %v675 = vpop.f32.mrb[0].mxu0
    %v676 = vpop.f32.mrb[0].mxu0
    %v677 = vadd.f32 %v581, %v676
    %v678 = vpop.f32.mrb[0].mxu0
    %679 = vmatprep.mubr.bf16.mxu0 0
    %680 = vmatmul.mubr.bf16.gmra.mrb[0].mxu0 %v546
    %v681 = vpop.f32.mrb[0].mxu0
    %v682 = vadd.f32 %v581, %v681
    %v683 = vpop.f32.mrb[0].mxu0
    %v684 = vpop.f32.mrb[0].mxu0
    %v685 = vadd.f32 %v581, %v684
    %v686 = vpop.f32.mrb[0].mxu0
    %687 = vmatprep.mubr.bf16.mxu0 0
    %688 = vmatmul.mubr.bf16.gmra.mrb[0].mxu0 %v547
    %v689 = vpop.f32.mrb[0].mxu0
    %v690 = vadd.f32 %v581, %v689
    %v691 = vpop.f32.mrb[0].mxu0
    %v692 = vpop.f32.mrb[0].mxu0
    %v693 = vadd.f32 %v581, %v692
    %v694 = vpop.f32.mrb[0].mxu0
    %695 = vmatprep.mubr.bf16.mxu0 0
    %696 = vmatmul.mubr.bf16.gmra.mrb[0].mxu0 %v548
    %v697 = vpop.f32.mrb[0].mxu0
    %v698 = vadd.f32 %v581, %v697
    %v699 = vpop.f32.mrb[0].mxu0
    %v700 = vpop.f32.mrb[0].mxu0
    %v701 = vadd.f32 %v581, %v700
    %v702 = vpop.f32.mrb[0].mxu0
    %703 = vmatprep.mubr.bf16.mxu0 0
    %704 = vmatmul.mubr.bf16.gmra.mrb[0].mxu0 %v549
    %v705 = vpop.f32.mrb[0].mxu0
    %v706 = vadd.f32 %v581, %v705
    %v707 = vpop.f32.mrb[0].mxu0
    %v708 = vpop.f32.mrb[0].mxu0
    %v709 = vadd.f32 %v581, %v708
    %v710 = vpop.f32.mrb[0].mxu0
    %711 = vmatprep.mubr.bf16.mxu0 0
    %712 = vmatmul.mubr.bf16.gmra.mrb[0].mxu0 %v550
    %v713 = vpop.f32.mrb[0].mxu0
    %v714 = vadd.f32 %v581, %v713
    %v715 = vpop.f32.mrb[0].mxu0
    %v716 = vpop.f32.mrb[0].mxu0
    %v717 = vadd.f32 %v581, %v716
    %v718 = vpop.f32.mrb[0].mxu0
    %719 = vmatprep.mubr.bf16.mxu0 0
    %720 = vmatmul.mubr.bf16.gmra.mrb[0].mxu0 %v551
    %v721 = vpop.f32.mrb[0].mxu0
    %v722 = vadd.f32 %v581, %v721
    %v723 = vpop.f32.mrb[0].mxu0
    %v724 = vpop.f32.mrb[0].mxu0
    %v725 = vadd.f32 %v581, %v724
    %v726 = vpop.f32.mrb[0].mxu0
    %727 = vmatprep.mubr.bf16.mxu0 0
    %728 = vmatmul.mubr.bf16.gmra.mrb[0].mxu0 %v552
    %v729 = vpop.f32.mrb[0].mxu0
    %v730 = vadd.f32 %v581, %v729
    %v731 = vpop.f32.mrb[0].mxu0
    %v732 = vpop.f32.mrb[0].mxu0
    %v733 = vadd.f32 %v581, %v732
    %v734 = vpop.f32.mrb[0].mxu0
    %735 = vmatprep.mubr.bf16.mxu0 0
    %736 = vmatmul.mubr.bf16.gmra.mrb[0].mxu0 %v553
    %v737 = vpop.f32.mrb[0].mxu0
    %v738 = vadd.f32 %v581, %v737
    %v739 = vpop.f32.mrb[0].mxu0
    %v740 = vpop.f32.mrb[0].mxu0
    %v741 = vadd.f32 %v581, %v740
    %v742 = vpop.f32.mrb[0].mxu0
    %743 = vmatprep.mubr.bf16.mxu0 0
    %744 = vmatmul.mubr.bf16.gmra.mrb[0].mxu0 %v554
    %v745 = vpop.f32.mrb[0].mxu0
    %v746 = vadd.f32 %v581, %v745
    %v747 = vpop.f32.mrb[0].mxu0
    %v748 = vpop.f32.mrb[0].mxu0
    %v749 = vadd.f32 %v581, %v748
    %v750 = vpop.f32.mrb[0].mxu0
    %751 = vmatprep.mubr.bf16.mxu0 0
    %752 = vmatmul.mubr.bf16.gmra.mrb[0].mxu0 %v555
    %v753 = vpop.f32.mrb[0].mxu0
    %v754 = vadd.f32 %v581, %v753
    %v755 = vpop.f32.mrb[0].mxu0
    %v756 = vpop.f32.mrb[0].mxu0
    %v757 = vadd.f32 %v581, %v756
    %v758 = vpop.f32.mrb[0].mxu0
    %759 = vmatprep.mubr.bf16.mxu0 0
    %760 = vmatmul.mubr.bf16.gmra.mrb[0].mxu0 %v556
    %v761 = vpop.f32.mrb[0].mxu0
    %v762 = vadd.f32 %v581, %v761
    %v763 = vpop.f32.mrb[0].mxu0
    %v764 = vpop.f32.mrb[0].mxu0
    %v765 = vadd.f32 %v581, %v764
    %v766 = vpop.f32.mrb[0].mxu0
    %767 = vmatprep.mubr.bf16.mxu0 0
    %768 = vmatmul.mubr.bf16.gmra.mrb[0].mxu0 %v557
    %v769 = vpop.f32.mrb[0].mxu0
    %v770 = vadd.f32 %v581, %v769
    %v771 = vpop.f32.mrb[0].mxu0
    %v772 = vpop.f32.mrb[0].mxu0
    %v773 = vadd.f32 %v581, %v772
    %v774 = vpop.f32.mrb[0].mxu0
    %775 = vmatprep.mubr.bf16.mxu0 0
    %776 = vmatmul.mubr.bf16.gmra.mrb[0].mxu0 %v558
    %v777 = vpop.f32.mrb[0].mxu0
    %v778 = vadd.f32 %v581, %v777
    %v779 = vpop.f32.mrb[0].mxu0
    %v780 = vpop.f32.mrb[0].mxu0
    %v781 = vadd.f32 %v581, %v780
    %v782 = vpop.f32.mrb[0].mxu0
    %783 = vmatprep.mubr.bf16.mxu0 0
    %784 = vmatmul.mubr.bf16.gmra.mrb[0].mxu0 %v559
    %v785 = vpop.f32.mrb[0].mxu0
    %v786 = vadd.f32 %v581, %v785
    %v787 = vpop.f32.mrb[0].mxu0
    %v788 = vpop.f32.mrb[0].mxu0
    %v789 = vadd.f32 %v581, %v788
    %v790 = vpop.f32.mrb[0].mxu0
    %791 = vdwg.mxu0
    %v792 = vmax.f32 %v666, 0.0
    %v793 = vmax.f32 %v669, 0.0
    %v794 = vmax.f32 %v674, 0.0
    %v795 = vmax.f32 %v677, 0.0
    %v796 = vmax.f32 %v682, 0.0
    %v797 = vmax.f32 %v685, 0.0
    %v798 = vmax.f32 %v690, 0.0
    %v799 = vmax.f32 %v693, 0.0
    %v800 = vmax.f32 %v698, 0.0
    %v801 = vmax.f32 %v701, 0.0
    %v802 = vmax.f32 %v706, 0.0
    %v803 = vmax.f32 %v709, 0.0
    %v804 = vmax.f32 %v714, 0.0
    %v805 = vmax.f32 %v717, 0.0
    %v806 = vmax.f32 %v722, 0.0
    %v807 = vmax.f32 %v725, 0.0
    %v808 = vmax.f32 %v730, 0.0
    %v809 = vmax.f32 %v733, 0.0
    %v810 = vmax.f32 %v738, 0.0
    %v811 = vmax.f32 %v741, 0.0
    %v812 = vmax.f32 %v746, 0.0
    %v813 = vmax.f32 %v749, 0.0
    %v814 = vmax.f32 %v754, 0.0
    %v815 = vmax.f32 %v757, 0.0
    %v816 = vmax.f32 %v762, 0.0
    %v817 = vmax.f32 %v765, 0.0
    %v818 = vmax.f32 %v770, 0.0
    %v819 = vmax.f32 %v773, 0.0
    %v820 = vmax.f32 %v778, 0.0
    %v821 = vmax.f32 %v781, 0.0
    %v822 = vmax.f32 %v786, 0.0
    %v823 = vmax.f32 %v789, 0.0
    %v824 = vpack.c.bf16 %v793, %v792
    %v825 = vpack.c.bf16 %v795, %v794
    %v826 = vpack.c.bf16 %v797, %v796
    %v827 = vpack.c.bf16 %v799, %v798
    %v828 = vpack.c.bf16 %v801, %v800
    %v829 = vpack.c.bf16 %v803, %v802
    %v830 = vpack.c.bf16 %v805, %v804
    %v831 = vpack.c.bf16 %v807, %v806
    %v832 = vpack.c.bf16 %v809, %v808
    %v833 = vpack.c.bf16 %v811, %v810
    %v834 = vpack.c.bf16 %v813, %v812
    %v835 = vpack.c.bf16 %v815, %v814
    %v836 = vpack.c.bf16 %v817, %v816
    %v837 = vpack.c.bf16 %v819, %v818
    %v838 = vpack.c.bf16 %v821, %v820
    %v839 = vpack.c.bf16 %v823, %v822
    %v840 = vld [vmem:[%s4] sm:$0xf]
    %v841 = vld [vmem:[%s4 + $0x4] sm:$0xf]
    %v842 = vld [vmem:[%s4 + $0x8] sm:$0xf]
    %v843 = vld [vmem:[%s4 + $0xc] sm:$0xf]
    %v844 = vld [vmem:[%s4 + $0x10] sm:$0xf]
    %v845 = vld [vmem:[%s4 + $0x14] sm:$0xf]
    %v846 = vld [vmem:[%s4 + $0x18] sm:$0xf]
    %v847 = vld [vmem:[%s4 + $0x1c] sm:$0xf]
    %v848 = vld [vmem:[%s4 + $0x20] sm:$0xf]
    %v849 = vld [vmem:[%s4 + $0x24] sm:$0xf]
    %v850 = vld [vmem:[%s4 + $0x28] sm:$0xf]
    %v851 = vld [vmem:[%s4 + $0x2c] sm:$0xf]
    %v852 = vld [vmem:[%s4 + $0x30] sm:$0xf]
    %v853 = vld [vmem:[%s4 + $0x34] sm:$0xf]
    %v854 = vld [vmem:[%s4 + $0x38] sm:$0xf]
    %v855 = vld [vmem:[%s4 + $0x3c] sm:$0xf]
    %v856 = vld [vmem:[%s5] sm:$0x1]
    %v858 = vlaneseq
    %v859 = vshrl.u32 %v858, 7
    %v860 = vsub.s32 0, %v859
    %v861 = vrot.slane %v856, %v860
    %v879 = vunpack.c.l.b16 %v840
    %v880 = vunpack.c.l.b16 %v841
    %v881 = vunpack.c.l.b16 %v842
    %v882 = vunpack.c.l.b16 %v843
    %v883 = vunpack.c.l.b16 %v844
    %v884 = vunpack.c.l.b16 %v845
    %v885 = vunpack.c.l.b16 %v846
    %v886 = vunpack.c.l.b16 %v847
    %v887 = vunpack.c.l.b16 %v848
    %v888 = vunpack.c.l.b16 %v849
    %v889 = vunpack.c.l.b16 %v850
    %v890 = vunpack.c.l.b16 %v851
    %v891 = vunpack.c.l.b16 %v852
    %v892 = vunpack.c.l.b16 %v853
    %v893 = vunpack.c.l.b16 %v854
    %v894 = vunpack.c.l.b16 %v855
    %v895 = vpack.c.b16 %v880, %v879
    %v896 = vpack.c.b16 %v882, %v881
    %v897 = vpack.c.b16 %v884, %v883
    %v898 = vpack.c.b16 %v886, %v885
    %v899 = vpack.c.b16 %v888, %v887
    %v900 = vpack.c.b16 %v890, %v889
    %v901 = vpack.c.b16 %v892, %v891
    %v902 = vpack.c.b16 %v894, %v893
    %911 = vmatprep.subr.bf16.mxu0 0
    %912 = vmatpush1.bf16.msra.mxu0 %v895
    %913 = vmatprep.subr.bf16.mxu0 0
    %914 = vmatpush1.bf16.msra.mxu0 %v896
    %915 = vmatprep.subr.bf16.mxu0 0
    %916 = vmatpush1.bf16.msra.mxu0 %v897
    %917 = vmatprep.subr.bf16.mxu0 0
    %918 = vmatpush1.bf16.msra.mxu0 %v898
    %919 = vmatprep.subr.bf16.mxu0 0
    %920 = vmatpush1.bf16.msra.mxu0 %v899
    %921 = vmatprep.subr.bf16.mxu0 0
    %922 = vmatpush1.bf16.msra.mxu0 %v900
    %923 = vmatprep.subr.bf16.mxu0 0
    %924 = vmatpush1.bf16.msra.mxu0 %v901
    %925 = vmatprep.subr.bf16.mxu0 0
    %926 = vmatpush1.bf16.msra.mxu0 %v902
    %927 = vmatprep.subr.bf16.mxu0 0
    %928 = vmatpush1.bf16.msra.mxu0 0
    %929 = vmatprep.subr.bf16.mxu0 0
    %930 = vmatpush1.bf16.msra.mxu0 0
    %931 = vmatprep.subr.bf16.mxu0 0
    %932 = vmatpush1.bf16.msra.mxu0 0
    %933 = vmatprep.subr.bf16.mxu0 0
    %934 = vmatpush1.bf16.msra.mxu0 0
    %935 = vmatprep.subr.bf16.mxu0 0
    %936 = vmatpush1.bf16.msra.mxu0 0
    %937 = vmatprep.subr.bf16.mxu0 0
    %938 = vmatpush1.bf16.msra.mxu0 0
    %939 = vmatprep.subr.bf16.mxu0 0
    %940 = vmatpush1.bf16.msra.mxu0 0
    %941 = vmatprep.subr.bf16.mxu0 0
    %942 = vmatpush1.bf16.msra.mxu0 0
    %943 = vmatprep.mubr.bf16.mxu0 0
    %944 = vmatmul.mubr.bf16.gmra.mrb[0].mxu0 %v824
    %v945 = vpop.f32.mrb[0].mxu0
    %v946 = vadd.f32 %v861, %v945
    %v947 = vpop.f32.mrb[0].mxu0
    %v948 = vpop.f32.mrb[0].mxu0
    %v949 = vadd.f32 %v861, %v948
    %v950 = vpop.f32.mrb[0].mxu0
    %951 = vmatprep.mubr.bf16.mxu0 0
    %952 = vmatmul.mubr.bf16.gmra.mrb[0].mxu0 %v825
    %v953 = vpop.f32.mrb[0].mxu0
    %v954 = vadd.f32 %v861, %v953
    %v955 = vpop.f32.mrb[0].mxu0
    %v956 = vpop.f32.mrb[0].mxu0
    %v957 = vadd.f32 %v861, %v956
    %v958 = vpop.f32.mrb[0].mxu0
    %959 = vmatprep.mubr.bf16.mxu0 0
    %960 = vmatmul.mubr.bf16.gmra.mrb[0].mxu0 %v826
    %v961 = vpop.f32.mrb[0].mxu0
    %v962 = vadd.f32 %v861, %v961
    %v963 = vpop.f32.mrb[0].mxu0
    %v964 = vpop.f32.mrb[0].mxu0
    %v965 = vadd.f32 %v861, %v964
    %v966 = vpop.f32.mrb[0].mxu0
    %967 = vmatprep.mubr.bf16.mxu0 0
    %968 = vmatmul.mubr.bf16.gmra.mrb[0].mxu0 %v827
    %v969 = vpop.f32.mrb[0].mxu0
    %v970 = vadd.f32 %v861, %v969
    %v971 = vpop.f32.mrb[0].mxu0
    %v972 = vpop.f32.mrb[0].mxu0
    %v973 = vadd.f32 %v861, %v972
    %v974 = vpop.f32.mrb[0].mxu0
    %975 = vmatprep.mubr.bf16.mxu0 0
    %976 = vmatmul.mubr.bf16.gmra.mrb[0].mxu0 %v828
    %v977 = vpop.f32.mrb[0].mxu0
    %v978 = vadd.f32 %v861, %v977
    %v979 = vpop.f32.mrb[0].mxu0
    %v980 = vpop.f32.mrb[0].mxu0
    %v981 = vadd.f32 %v861, %v980
    %v982 = vpop.f32.mrb[0].mxu0
    %983 = vmatprep.mubr.bf16.mxu0 0
    %984 = vmatmul.mubr.bf16.gmra.mrb[0].mxu0 %v829
    %v985 = vpop.f32.mrb[0].mxu0
    %v986 = vadd.f32 %v861, %v985
    %v987 = vpop.f32.mrb[0].mxu0
    %v988 = vpop.f32.mrb[0].mxu0
    %v989 = vadd.f32 %v861, %v988
    %v990 = vpop.f32.mrb[0].mxu0
    %991 = vmatprep.mubr.bf16.mxu0 0
    %992 = vmatmul.mubr.bf16.gmra.mrb[0].mxu0 %v830
    %v993 = vpop.f32.mrb[0].mxu0
    %v994 = vadd.f32 %v861, %v993
    %v995 = vpop.f32.mrb[0].mxu0
    %v996 = vpop.f32.mrb[0].mxu0
    %v997 = vadd.f32 %v861, %v996
    %v998 = vpop.f32.mrb[0].mxu0
    %999 = vmatprep.mubr.bf16.mxu0 0
    %1000 = vmatmul.mubr.bf16.gmra.mrb[0].mxu0 %v831
    %v1001 = vpop.f32.mrb[0].mxu0
    %v1002 = vadd.f32 %v861, %v1001
    %v1003 = vpop.f32.mrb[0].mxu0
    %v1004 = vpop.f32.mrb[0].mxu0
    %v1005 = vadd.f32 %v861, %v1004
    %v1006 = vpop.f32.mrb[0].mxu0
    %1007 = vmatprep.mubr.bf16.mxu0 0
    %1008 = vmatmul.mubr.bf16.gmra.mrb[0].mxu0 %v832
    %v1009 = vpop.f32.mrb[0].mxu0
    %v1010 = vadd.f32 %v861, %v1009
    %v1011 = vpop.f32.mrb[0].mxu0
    %v1012 = vpop.f32.mrb[0].mxu0
    %v1013 = vadd.f32 %v861, %v1012
    %v1014 = vpop.f32.mrb[0].mxu0
    %1015 = vmatprep.mubr.bf16.mxu0 0
    %1016 = vmatmul.mubr.bf16.gmra.mrb[0].mxu0 %v833
    %v1017 = vpop.f32.mrb[0].mxu0
    %v1018 = vadd.f32 %v861, %v1017
    %v1019 = vpop.f32.mrb[0].mxu0
    %v1020 = vpop.f32.mrb[0].mxu0
    %v1021 = vadd.f32 %v861, %v1020
    %v1022 = vpop.f32.mrb[0].mxu0
    %1023 = vmatprep.mubr.bf16.mxu0 0
    %1024 = vmatmul.mubr.bf16.gmra.mrb[0].mxu0 %v834
    %v1025 = vpop.f32.mrb[0].mxu0
    %v1026 = vadd.f32 %v861, %v1025
    %v1027 = vpop.f32.mrb[0].mxu0
    %v1028 = vpop.f32.mrb[0].mxu0
    %v1029 = vadd.f32 %v861, %v1028
    %v1030 = vpop.f32.mrb[0].mxu0
    %1031 = vmatprep.mubr.bf16.mxu0 0
    %1032 = vmatmul.mubr.bf16.gmra.mrb[0].mxu0 %v835
    %v1033 = vpop.f32.mrb[0].mxu0
    %v1034 = vadd.f32 %v861, %v1033
    %v1035 = vpop.f32.mrb[0].mxu0
    %v1036 = vpop.f32.mrb[0].mxu0
    %v1037 = vadd.f32 %v861, %v1036
    %v1038 = vpop.f32.mrb[0].mxu0
    %1039 = vmatprep.mubr.bf16.mxu0 0
    %1040 = vmatmul.mubr.bf16.gmra.mrb[0].mxu0 %v836
    %v1041 = vpop.f32.mrb[0].mxu0
    %v1042 = vadd.f32 %v861, %v1041
    %v1043 = vpop.f32.mrb[0].mxu0
    %v1044 = vpop.f32.mrb[0].mxu0
    %v1045 = vadd.f32 %v861, %v1044
    %v1046 = vpop.f32.mrb[0].mxu0
    %1047 = vmatprep.mubr.bf16.mxu0 0
    %1048 = vmatmul.mubr.bf16.gmra.mrb[0].mxu0 %v837
    %v1049 = vpop.f32.mrb[0].mxu0
    %v1050 = vadd.f32 %v861, %v1049
    %v1051 = vpop.f32.mrb[0].mxu0
    %v1052 = vpop.f32.mrb[0].mxu0
    %v1053 = vadd.f32 %v861, %v1052
    %v1054 = vpop.f32.mrb[0].mxu0
    %1055 = vmatprep.mubr.bf16.mxu0 0
    %1056 = vmatmul.mubr.bf16.gmra.mrb[0].mxu0 %v838
    %v1057 = vpop.f32.mrb[0].mxu0
    %v1058 = vadd.f32 %v861, %v1057
    %v1059 = vpop.f32.mrb[0].mxu0
    %v1060 = vpop.f32.mrb[0].mxu0
    %v1061 = vadd.f32 %v861, %v1060
    %v1062 = vpop.f32.mrb[0].mxu0
    %1063 = vmatprep.mubr.bf16.mxu0 0
    %1064 = vmatmul.mubr.bf16.gmra.mrb[0].mxu0 %v839
    %v1065 = vpop.f32.mrb[0].mxu0
    %v1066 = vadd.f32 %v861, %v1065
    %v1067 = vpop.f32.mrb[0].mxu0
    %v1068 = vpop.f32.mrb[0].mxu0
    %v1069 = vadd.f32 %v861, %v1068
    %v1070 = vpop.f32.mrb[0].mxu0
    %1071 = vdwg.mxu0
    %1073 = vset.pattern.permute.xlu0 1
    %1074 = vperm.xlu0 %1073, %v60
    %v1075 = vpop.permute.xlu0 %1074
    %1078 = vset.pattern.permute.xlu0 1
    %1079 = vperm.xlu0 %1078, %v61
    %v1080 = vpop.permute.xlu0 %1079
    %1083 = vset.pattern.permute.xlu0 1
    %1084 = vperm.xlu0 %1083, %v62
    %v1085 = vpop.permute.xlu0 %1084
    %1088 = vset.pattern.permute.xlu0 1
    %1089 = vperm.xlu0 %1088, %v63
    %v1090 = vpop.permute.xlu0 %1089
    %1093 = vset.pattern.permute.xlu0 1
    %1094 = vperm.xlu0 %1093, %v64
    %v1095 = vpop.permute.xlu0 %1094
    %1098 = vset.pattern.permute.xlu0 1
    %1099 = vperm.xlu0 %1098, %v65
    %v1100 = vpop.permute.xlu0 %1099
    %1103 = vset.pattern.permute.xlu0 1
    %1104 = vperm.xlu0 %1103, %v66
    %v1105 = vpop.permute.xlu0 %1104
    %1108 = vset.pattern.permute.xlu0 1
    %1109 = vperm.xlu0 %1108, %v67
    %v1110 = vpop.permute.xlu0 %1109
    %1113 = vset.pattern.permute.xlu0 1
    %1114 = vperm.xlu0 %1113, %v68
    %v1115 = vpop.permute.xlu0 %1114
    %1118 = vset.pattern.permute.xlu0 1
    %1119 = vperm.xlu0 %1118, %v69
    %v1120 = vpop.permute.xlu0 %1119
    %1123 = vset.pattern.permute.xlu0 1
    %1124 = vperm.xlu0 %1123, %v70
    %v1125 = vpop.permute.xlu0 %1124
    %1128 = vset.pattern.permute.xlu0 1
    %1129 = vperm.xlu0 %1128, %v71
    %v1130 = vpop.permute.xlu0 %1129
    %1133 = vset.pattern.permute.xlu0 1
    %1134 = vperm.xlu0 %1133, %v72
    %v1135 = vpop.permute.xlu0 %1134
    %1138 = vset.pattern.permute.xlu0 1
    %1139 = vperm.xlu0 %1138, %v73
    %v1140 = vpop.permute.xlu0 %1139
    %1143 = vset.pattern.permute.xlu0 1
    %1144 = vperm.xlu0 %1143, %v74
    %v1145 = vpop.permute.xlu0 %1144
    %1148 = vset.pattern.permute.xlu0 1
    %1149 = vperm.xlu0 %1148, %v75
    %v1150 = vpop.permute.xlu0 %1149
    %1153 = vset.pattern.permute.xlu0 1
    %1154 = vperm.xlu0 %1153, %v76
    %v1155 = vpop.permute.xlu0 %1154
    %1158 = vset.pattern.permute.xlu0 1
    %1159 = vperm.xlu0 %1158, %v77
    %v1160 = vpop.permute.xlu0 %1159
    %1163 = vset.pattern.permute.xlu0 1
    %1164 = vperm.xlu0 %1163, %v78
    %v1165 = vpop.permute.xlu0 %1164
    %1168 = vset.pattern.permute.xlu0 1
    %1169 = vperm.xlu0 %1168, %v79
    %v1170 = vpop.permute.xlu0 %1169
    %1173 = vset.pattern.permute.xlu0 1
    %1174 = vperm.xlu0 %1173, %v80
    %v1175 = vpop.permute.xlu0 %1174
    %1178 = vset.pattern.permute.xlu0 1
    %1179 = vperm.xlu0 %1178, %v81
    %v1180 = vpop.permute.xlu0 %1179
    %1183 = vset.pattern.permute.xlu0 1
    %1184 = vperm.xlu0 %1183, %v82
    %v1185 = vpop.permute.xlu0 %1184
    %1188 = vset.pattern.permute.xlu0 1
    %1189 = vperm.xlu0 %1188, %v83
    %v1190 = vpop.permute.xlu0 %1189
    %1193 = vset.pattern.permute.xlu0 1
    %1194 = vperm.xlu0 %1193, %v84
    %v1195 = vpop.permute.xlu0 %1194
    %1198 = vset.pattern.permute.xlu0 1
    %1199 = vperm.xlu0 %1198, %v85
    %v1200 = vpop.permute.xlu0 %1199
    %1203 = vset.pattern.permute.xlu0 1
    %1204 = vperm.xlu0 %1203, %v86
    %v1205 = vpop.permute.xlu0 %1204
    %1208 = vset.pattern.permute.xlu0 1
    %1209 = vperm.xlu0 %1208, %v87
    %v1210 = vpop.permute.xlu0 %1209
    %1213 = vset.pattern.permute.xlu0 1
    %1214 = vperm.xlu0 %1213, %v88
    %v1215 = vpop.permute.xlu0 %1214
    %1218 = vset.pattern.permute.xlu0 1
    %1219 = vperm.xlu0 %1218, %v89
    %v1220 = vpop.permute.xlu0 %1219
    %1223 = vset.pattern.permute.xlu0 1
    %1224 = vperm.xlu0 %1223, %v90
    %v1225 = vpop.permute.xlu0 %1224
    %1228 = vset.pattern.permute.xlu0 1
    %1229 = vperm.xlu0 %1228, %v91
    %v1230 = vpop.permute.xlu0 %1229
    %v1232 = vmul.f32 %v946, %v1075
    %v1233 = vmul.f32 %v949, %v1080
    %v1234 = vmul.f32 %v954, %v1085
    %v1235 = vmul.f32 %v957, %v1090
    %v1236 = vmul.f32 %v962, %v1095
    %v1237 = vmul.f32 %v965, %v1100
    %v1238 = vmul.f32 %v970, %v1105
    %v1239 = vmul.f32 %v973, %v1110
    %v1240 = vmul.f32 %v978, %v1115
    %v1241 = vmul.f32 %v981, %v1120
    %v1242 = vmul.f32 %v986, %v1125
    %v1243 = vmul.f32 %v989, %v1130
    %v1244 = vmul.f32 %v994, %v1135
    %v1245 = vmul.f32 %v997, %v1140
    %v1246 = vmul.f32 %v1002, %v1145
    %v1247 = vmul.f32 %v1005, %v1150
    %v1248 = vmul.f32 %v1010, %v1155
    %v1249 = vmul.f32 %v1013, %v1160
    %v1250 = vmul.f32 %v1018, %v1165
    %v1251 = vmul.f32 %v1021, %v1170
    %v1252 = vmul.f32 %v1026, %v1175
    %v1253 = vmul.f32 %v1029, %v1180
    %v1254 = vmul.f32 %v1034, %v1185
    %v1255 = vmul.f32 %v1037, %v1190
    %v1256 = vmul.f32 %v1042, %v1195
    %v1257 = vmul.f32 %v1045, %v1200
    %v1258 = vmul.f32 %v1050, %v1205
    %v1259 = vmul.f32 %v1053, %v1210
    %v1260 = vmul.f32 %v1058, %v1215
    %v1261 = vmul.f32 %v1061, %v1220
    %v1262 = vmul.f32 %v1066, %v1225
    %v1263 = vmul.f32 %v1069, %v1230
    %1264 = vst [vmem:[#allocation2] sm:$0xff] %v1232
    %1265 = vst [vmem:[#allocation2 + $0x8] sm:$0xff] %v1233
    %1266 = vst [vmem:[#allocation2 + $0x10] sm:$0xff] %v1234
    %1267 = vst [vmem:[#allocation2 + $0x18] sm:$0xff] %v1235
    %1268 = vst [vmem:[#allocation2 + $0x20] sm:$0xff] %v1236
    %1269 = vst [vmem:[#allocation2 + $0x28] sm:$0xff] %v1237
    %1270 = vst [vmem:[#allocation2 + $0x30] sm:$0xff] %v1238
    %1271 = vst [vmem:[#allocation2 + $0x38] sm:$0xff] %v1239
    %1272 = vst [vmem:[#allocation2 + $0x40] sm:$0xff] %v1240
    %1273 = vst [vmem:[#allocation2 + $0x48] sm:$0xff] %v1241
    %1274 = vst [vmem:[#allocation2 + $0x50] sm:$0xff] %v1242
    %1275 = vst [vmem:[#allocation2 + $0x58] sm:$0xff] %v1243
    %1276 = vst [vmem:[#allocation2 + $0x60] sm:$0xff] %v1244
    %1277 = vst [vmem:[#allocation2 + $0x68] sm:$0xff] %v1245
    %1278 = vst [vmem:[#allocation2 + $0x70] sm:$0xff] %v1246
    %1279 = vst [vmem:[#allocation2 + $0x78] sm:$0xff] %v1247
    %1280 = vst [vmem:[#allocation2 + $0x80] sm:$0xff] %v1248
    %1281 = vst [vmem:[#allocation2 + $0x88] sm:$0xff] %v1249
    %1282 = vst [vmem:[#allocation2 + $0x90] sm:$0xff] %v1250
    %1283 = vst [vmem:[#allocation2 + $0x98] sm:$0xff] %v1251
    %1284 = vst [vmem:[#allocation2 + $0xa0] sm:$0xff] %v1252
    %1285 = vst [vmem:[#allocation2 + $0xa8] sm:$0xff] %v1253
    %1286 = vst [vmem:[#allocation2 + $0xb0] sm:$0xff] %v1254
    %1287 = vst [vmem:[#allocation2 + $0xb8] sm:$0xff] %v1255
    %1288 = vst [vmem:[#allocation2 + $0xc0] sm:$0xff] %v1256
    %1289 = vst [vmem:[#allocation2 + $0xc8] sm:$0xff] %v1257
    %1290 = vst [vmem:[#allocation2 + $0xd0] sm:$0xff] %v1258
    %1291 = vst [vmem:[#allocation2 + $0xd8] sm:$0xff] %v1259
    %1292 = vst [vmem:[#allocation2 + $0xe0] sm:$0xff] %v1260
    %1293 = vst [vmem:[#allocation2 + $0xe8] sm:$0xff] %v1261
    %1294 = vst [vmem:[#allocation2 + $0xf0] sm:$0xff] %v1262
    %1295 = vst [vmem:[#allocation2 + $0xf8] sm:$0xff] %v1263
    %1296 = vmax.xlane.f32.xlu0 %v1232
    %v1297 = vpop.xlane.xlu0 %1296
    %1298 = vmax.xlane.f32.xlu0 %v1233
    %v1299 = vpop.xlane.xlu0 %1298
    %1300 = vmax.xlane.f32.xlu0 %v1234
    %v1301 = vpop.xlane.xlu0 %1300
    %1302 = vmax.xlane.f32.xlu0 %v1235
    %v1303 = vpop.xlane.xlu0 %1302
    %1304 = vmax.xlane.f32.xlu0 %v1236
    %v1305 = vpop.xlane.xlu0 %1304
    %1306 = vmax.xlane.f32.xlu0 %v1237
    %v1307 = vpop.xlane.xlu0 %1306
    %1308 = vmax.xlane.f32.xlu0 %v1238
    %v1309 = vpop.xlane.xlu0 %1308
    %1310 = vmax.xlane.f32.xlu0 %v1239
    %v1311 = vpop.xlane.xlu0 %1310
    %1312 = vmax.xlane.f32.xlu0 %v1240
    %v1313 = vpop.xlane.xlu0 %1312
    %1314 = vmax.xlane.f32.xlu0 %v1241
    %v1315 = vpop.xlane.xlu0 %1314
    %1316 = vmax.xlane.f32.xlu0 %v1242
    %v1317 = vpop.xlane.xlu0 %1316
    %1318 = vmax.xlane.f32.xlu0 %v1243
    %v1319 = vpop.xlane.xlu0 %1318
    %1320 = vmax.xlane.f32.xlu0 %v1244
    %v1321 = vpop.xlane.xlu0 %1320
    %1322 = vmax.xlane.f32.xlu0 %v1245
    %v1323 = vpop.xlane.xlu0 %1322
    %1324 = vmax.xlane.f32.xlu0 %v1246
    %v1325 = vpop.xlane.xlu0 %1324
    %1326 = vmax.xlane.f32.xlu0 %v1247
    %v1327 = vpop.xlane.xlu0 %1326
    %1328 = vmax.xlane.f32.xlu0 %v1248
    %v1329 = vpop.xlane.xlu0 %1328
    %1330 = vmax.xlane.f32.xlu0 %v1249
    %v1331 = vpop.xlane.xlu0 %1330
    %1332 = vmax.xlane.f32.xlu0 %v1250
    %v1333 = vpop.xlane.xlu0 %1332
    %1334 = vmax.xlane.f32.xlu0 %v1251
    %v1335 = vpop.xlane.xlu0 %1334
    %1336 = vmax.xlane.f32.xlu0 %v1252
    %v1337 = vpop.xlane.xlu0 %1336
    %1338 = vmax.xlane.f32.xlu0 %v1253
    %v1339 = vpop.xlane.xlu0 %1338
    %1340 = vmax.xlane.f32.xlu0 %v1254
    %v1341 = vpop.xlane.xlu0 %1340
    %1342 = vmax.xlane.f32.xlu0 %v1255
    %v1343 = vpop.xlane.xlu0 %1342
    %1344 = vmax.xlane.f32.xlu0 %v1256
    %v1345 = vpop.xlane.xlu0 %1344
    %1346 = vmax.xlane.f32.xlu0 %v1257
    %v1347 = vpop.xlane.xlu0 %1346
    %1348 = vmax.xlane.f32.xlu0 %v1258
    %v1349 = vpop.xlane.xlu0 %1348
    %1350 = vmax.xlane.f32.xlu0 %v1259
    %v1351 = vpop.xlane.xlu0 %1350
    %1352 = vmax.xlane.f32.xlu0 %v1260
    %v1353 = vpop.xlane.xlu0 %1352
    %1354 = vmax.xlane.f32.xlu0 %v1261
    %v1355 = vpop.xlane.xlu0 %1354
    %1356 = vmax.xlane.f32.xlu0 %v1262
    %v1357 = vpop.xlane.xlu0 %1356
    %1358 = vmax.xlane.f32.xlu0 %v1263
    %v1359 = vpop.xlane.xlu0 %1358
    %v1360 = vsub.f32 %v1232, %v1297
    %v1361 = vsub.f32 %v1233, %v1299
    %v1362 = vsub.f32 %v1234, %v1301
    %v1363 = vsub.f32 %v1235, %v1303
    %v1364 = vsub.f32 %v1236, %v1305
    %v1365 = vsub.f32 %v1237, %v1307
    %v1366 = vsub.f32 %v1238, %v1309
    %v1367 = vsub.f32 %v1239, %v1311
    %v1368 = vsub.f32 %v1240, %v1313
    %v1369 = vsub.f32 %v1241, %v1315
    %v1370 = vsub.f32 %v1242, %v1317
    %v1371 = vsub.f32 %v1243, %v1319
    %v1372 = vsub.f32 %v1244, %v1321
    %v1373 = vsub.f32 %v1245, %v1323
    %v1374 = vsub.f32 %v1246, %v1325
    %v1375 = vsub.f32 %v1247, %v1327
    %v1376 = vsub.f32 %v1248, %v1329
    %v1377 = vsub.f32 %v1249, %v1331
    %v1378 = vsub.f32 %v1250, %v1333
    %v1379 = vsub.f32 %v1251, %v1335
    %v1380 = vsub.f32 %v1252, %v1337
    %v1381 = vsub.f32 %v1253, %v1339
    %v1382 = vsub.f32 %v1254, %v1341
    %v1383 = vsub.f32 %v1255, %v1343
    %v1384 = vsub.f32 %v1256, %v1345
    %v1385 = vsub.f32 %v1257, %v1347
    %v1386 = vsub.f32 %v1258, %v1349
    %v1387 = vsub.f32 %v1259, %v1351
    %v1388 = vsub.f32 %v1260, %v1353
    %v1389 = vsub.f32 %v1261, %v1355
    %v1390 = vsub.f32 %v1262, %v1357
    %v1391 = vsub.f32 %v1263, %v1359
    %v1392 = vmul.f32 %v1360, 1.442695
    %v1393 = vpow.pop %v1392
    %v1394 = vmul.f32 %v1361, 1.442695
    %v1395 = vpow.pop %v1394
    %v1396 = vmul.f32 %v1362, 1.442695
    %v1397 = vpow.pop %v1396
    %v1398 = vmul.f32 %v1363, 1.442695
    %v1399 = vpow.pop %v1398
    %v1400 = vmul.f32 %v1364, 1.442695
    %v1401 = vpow.pop %v1400
    %v1402 = vmul.f32 %v1365, 1.442695
    %v1403 = vpow.pop %v1402
    %v1404 = vmul.f32 %v1366, 1.442695
    %v1405 = vpow.pop %v1404
    %v1406 = vmul.f32 %v1367, 1.442695
    %v1407 = vpow.pop %v1406
    %v1408 = vmul.f32 %v1368, 1.442695
    %v1409 = vpow.pop %v1408
    %v1410 = vmul.f32 %v1369, 1.442695
    %v1411 = vpow.pop %v1410
    %v1412 = vmul.f32 %v1370, 1.442695
    %v1413 = vpow.pop %v1412
    %v1414 = vmul.f32 %v1371, 1.442695
    %v1415 = vpow.pop %v1414
    %v1416 = vmul.f32 %v1372, 1.442695
    %v1417 = vpow.pop %v1416
    %v1418 = vmul.f32 %v1373, 1.442695
    %v1419 = vpow.pop %v1418
    %v1420 = vmul.f32 %v1374, 1.442695
    %v1421 = vpow.pop %v1420
    %v1422 = vmul.f32 %v1375, 1.442695
    %v1423 = vpow.pop %v1422
    %v1424 = vmul.f32 %v1376, 1.442695
    %v1425 = vpow.pop %v1424
    %v1426 = vmul.f32 %v1377, 1.442695
    %v1427 = vpow.pop %v1426
    %v1428 = vmul.f32 %v1378, 1.442695
    %v1429 = vpow.pop %v1428
    %v1430 = vmul.f32 %v1379, 1.442695
    %v1431 = vpow.pop %v1430
    %v1432 = vmul.f32 %v1380, 1.442695
    %v1433 = vpow.pop %v1432
    %v1434 = vmul.f32 %v1381, 1.442695
    %v1435 = vpow.pop %v1434
    %v1436 = vmul.f32 %v1382, 1.442695
    %v1437 = vpow.pop %v1436
    %v1438 = vmul.f32 %v1383, 1.442695
    %v1439 = vpow.pop %v1438
    %v1440 = vmul.f32 %v1384, 1.442695
    %v1441 = vpow.pop %v1440
    %v1442 = vmul.f32 %v1385, 1.442695
    %v1443 = vpow.pop %v1442
    %v1444 = vmul.f32 %v1386, 1.442695
    %v1445 = vpow.pop %v1444
    %v1446 = vmul.f32 %v1387, 1.442695
    %v1447 = vpow.pop %v1446
    %v1448 = vmul.f32 %v1388, 1.442695
    %v1449 = vpow.pop %v1448
    %v1450 = vmul.f32 %v1389, 1.442695
    %v1451 = vpow.pop %v1450
    %v1452 = vmul.f32 %v1390, 1.442695
    %v1453 = vpow.pop %v1452
    %v1454 = vmul.f32 %v1391, 1.442695
    %v1455 = vpow.pop %v1454
    %1456 = vadd.xlane.f32.xlu0 %v1393
    %v1457 = vpop.xlane.xlu0 %1456
    %1458 = vadd.xlane.f32.xlu0 %v1395
    %v1459 = vpop.xlane.xlu0 %1458
    %1460 = vadd.xlane.f32.xlu0 %v1397
    %v1461 = vpop.xlane.xlu0 %1460
    %1462 = vadd.xlane.f32.xlu0 %v1399
    %v1463 = vpop.xlane.xlu0 %1462
    %1464 = vadd.xlane.f32.xlu0 %v1401
    %v1465 = vpop.xlane.xlu0 %1464
    %1466 = vadd.xlane.f32.xlu0 %v1403
    %v1467 = vpop.xlane.xlu0 %1466
    %1468 = vadd.xlane.f32.xlu0 %v1405
    %v1469 = vpop.xlane.xlu0 %1468
    %1470 = vadd.xlane.f32.xlu0 %v1407
    %v1471 = vpop.xlane.xlu0 %1470
    %1472 = vadd.xlane.f32.xlu0 %v1409
    %v1473 = vpop.xlane.xlu0 %1472
    %1474 = vadd.xlane.f32.xlu0 %v1411
    %v1475 = vpop.xlane.xlu0 %1474
    %1476 = vadd.xlane.f32.xlu0 %v1413
    %v1477 = vpop.xlane.xlu0 %1476
    %1478 = vadd.xlane.f32.xlu0 %v1415
    %v1479 = vpop.xlane.xlu0 %1478
    %1480 = vadd.xlane.f32.xlu0 %v1417
    %v1481 = vpop.xlane.xlu0 %1480
    %1482 = vadd.xlane.f32.xlu0 %v1419
    %v1483 = vpop.xlane.xlu0 %1482
    %1484 = vadd.xlane.f32.xlu0 %v1421
    %v1485 = vpop.xlane.xlu0 %1484
    %1486 = vadd.xlane.f32.xlu0 %v1423
    %v1487 = vpop.xlane.xlu0 %1486
    %1488 = vadd.xlane.f32.xlu0 %v1425
    %v1489 = vpop.xlane.xlu0 %1488
    %1490 = vadd.xlane.f32.xlu0 %v1427
    %v1491 = vpop.xlane.xlu0 %1490
    %1492 = vadd.xlane.f32.xlu0 %v1429
    %v1493 = vpop.xlane.xlu0 %1492
    %1494 = vadd.xlane.f32.xlu0 %v1431
    %v1495 = vpop.xlane.xlu0 %1494
    %1496 = vadd.xlane.f32.xlu0 %v1433
    %v1497 = vpop.xlane.xlu0 %1496
    %1498 = vadd.xlane.f32.xlu0 %v1435
    %v1499 = vpop.xlane.xlu0 %1498
    %1500 = vadd.xlane.f32.xlu0 %v1437
    %v1501 = vpop.xlane.xlu0 %1500
    %1502 = vadd.xlane.f32.xlu0 %v1439
    %v1503 = vpop.xlane.xlu0 %1502
    %1504 = vadd.xlane.f32.xlu0 %v1441
    %v1505 = vpop.xlane.xlu0 %1504
    %1506 = vadd.xlane.f32.xlu0 %v1443
    %v1507 = vpop.xlane.xlu0 %1506
    %1508 = vadd.xlane.f32.xlu0 %v1445
    %v1509 = vpop.xlane.xlu0 %1508
    %1510 = vadd.xlane.f32.xlu0 %v1447
    %v1511 = vpop.xlane.xlu0 %1510
    %1512 = vadd.xlane.f32.xlu0 %v1449
    %v1513 = vpop.xlane.xlu0 %1512
    %1514 = vadd.xlane.f32.xlu0 %v1451
    %v1515 = vpop.xlane.xlu0 %1514
    %1516 = vadd.xlane.f32.xlu0 %v1453
    %v1517 = vpop.xlane.xlu0 %1516
    %1518 = vadd.xlane.f32.xlu0 %v1455
    %v1519 = vpop.xlane.xlu0 %1518
    %v1520 = vlog2.pop %v1457
    %v1521 = vmul.f32 %v1520, 0.6931472
    %v1522 = vlog2.pop %v1459
    %v1523 = vmul.f32 %v1522, 0.6931472
    %v1524 = vlog2.pop %v1461
    %v1525 = vmul.f32 %v1524, 0.6931472
    %v1526 = vlog2.pop %v1463
    %v1527 = vmul.f32 %v1526, 0.6931472
    %v1528 = vlog2.pop %v1465
    %v1529 = vmul.f32 %v1528, 0.6931472
    %v1530 = vlog2.pop %v1467
    %v1531 = vmul.f32 %v1530, 0.6931472
    %v1532 = vlog2.pop %v1469
    %v1533 = vmul.f32 %v1532, 0.6931472
    %v1534 = vlog2.pop %v1471
    %v1535 = vmul.f32 %v1534, 0.6931472
    %v1536 = vlog2.pop %v1473
    %v1537 = vmul.f32 %v1536, 0.6931472
    %v1538 = vlog2.pop %v1475
    %v1539 = vmul.f32 %v1538, 0.6931472
    %v1540 = vlog2.pop %v1477
    %v1541 = vmul.f32 %v1540, 0.6931472
    %v1542 = vlog2.pop %v1479
    %v1543 = vmul.f32 %v1542, 0.6931472
    %v1544 = vlog2.pop %v1481
    %v1545 = vmul.f32 %v1544, 0.6931472
    %v1546 = vlog2.pop %v1483
    %v1547 = vmul.f32 %v1546, 0.6931472
    %v1548 = vlog2.pop %v1485
    %v1549 = vmul.f32 %v1548, 0.6931472
    %v1550 = vlog2.pop %v1487
    %v1551 = vmul.f32 %v1550, 0.6931472
    %v1552 = vlog2.pop %v1489
    %v1553 = vmul.f32 %v1552, 0.6931472
    %v1554 = vlog2.pop %v1491
    %v1555 = vmul.f32 %v1554, 0.6931472
    %v1556 = vlog2.pop %v1493
    %v1557 = vmul.f32 %v1556, 0.6931472
    %v1558 = vlog2.pop %v1495
    %v1559 = vmul.f32 %v1558, 0.6931472
    %v1560 = vlog2.pop %v1497
    %v1561 = vmul.f32 %v1560, 0.6931472
    %v1562 = vlog2.pop %v1499
    %v1563 = vmul.f32 %v1562, 0.6931472
    %v1564 = vlog2.pop %v1501
    %v1565 = vmul.f32 %v1564, 0.6931472
    %v1566 = vlog2.pop %v1503
    %v1567 = vmul.f32 %v1566, 0.6931472
    %v1568 = vlog2.pop %v1505
    %v1569 = vmul.f32 %v1568, 0.6931472
    %v1570 = vlog2.pop %v1507
    %v1571 = vmul.f32 %v1570, 0.6931472
    %v1572 = vlog2.pop %v1509
    %v1573 = vmul.f32 %v1572, 0.6931472
    %v1574 = vlog2.pop %v1511
    %v1575 = vmul.f32 %v1574, 0.6931472
    %v1576 = vlog2.pop %v1513
    %v1577 = vmul.f32 %v1576, 0.6931472
    %v1578 = vlog2.pop %v1515
    %v1579 = vmul.f32 %v1578, 0.6931472
    %v1580 = vlog2.pop %v1517
    %v1581 = vmul.f32 %v1580, 0.6931472
    %v1582 = vlog2.pop %v1519
    %v1583 = vmul.f32 %v1582, 0.6931472
    %v1584 = vsub.f32 %v1360, %v1521
    %v1585 = vsub.f32 %v1361, %v1523
    %v1586 = vsub.f32 %v1362, %v1525
    %v1587 = vsub.f32 %v1363, %v1527
    %v1588 = vsub.f32 %v1364, %v1529
    %v1589 = vsub.f32 %v1365, %v1531
    %v1590 = vsub.f32 %v1366, %v1533
    %v1591 = vsub.f32 %v1367, %v1535
    %v1592 = vsub.f32 %v1368, %v1537
    %v1593 = vsub.f32 %v1369, %v1539
    %v1594 = vsub.f32 %v1370, %v1541
    %v1595 = vsub.f32 %v1371, %v1543
    %v1596 = vsub.f32 %v1372, %v1545
    %v1597 = vsub.f32 %v1373, %v1547
    %v1598 = vsub.f32 %v1374, %v1549
    %v1599 = vsub.f32 %v1375, %v1551
    %v1600 = vsub.f32 %v1376, %v1553
    %v1601 = vsub.f32 %v1377, %v1555
    %v1602 = vsub.f32 %v1378, %v1557
    %v1603 = vsub.f32 %v1379, %v1559
    %v1604 = vsub.f32 %v1380, %v1561
    %v1605 = vsub.f32 %v1381, %v1563
    %v1606 = vsub.f32 %v1382, %v1565
    %v1607 = vsub.f32 %v1383, %v1567
    %v1608 = vsub.f32 %v1384, %v1569
    %v1609 = vsub.f32 %v1385, %v1571
    %v1610 = vsub.f32 %v1386, %v1573
    %v1611 = vsub.f32 %v1387, %v1575
    %v1612 = vsub.f32 %v1388, %v1577
    %v1613 = vsub.f32 %v1389, %v1579
    %v1614 = vsub.f32 %v1390, %v1581
    %v1615 = vsub.f32 %v1391, %v1583
    %1616 = vst [vmem:[#allocation4] sm:$0xff] %v1584
    %1617 = vst [vmem:[#allocation4 + $0x8] sm:$0xff] %v1585
    %1618 = vst [vmem:[#allocation4 + $0x10] sm:$0xff] %v1586
    %1619 = vst [vmem:[#allocation4 + $0x18] sm:$0xff] %v1587
    %1620 = vst [vmem:[#allocation4 + $0x20] sm:$0xff] %v1588
    %1621 = vst [vmem:[#allocation4 + $0x28] sm:$0xff] %v1589
    %1622 = vst [vmem:[#allocation4 + $0x30] sm:$0xff] %v1590
    %1623 = vst [vmem:[#allocation4 + $0x38] sm:$0xff] %v1591
    %1624 = vst [vmem:[#allocation4 + $0x40] sm:$0xff] %v1592
    %1625 = vst [vmem:[#allocation4 + $0x48] sm:$0xff] %v1593
    %1626 = vst [vmem:[#allocation4 + $0x50] sm:$0xff] %v1594
    %1627 = vst [vmem:[#allocation4 + $0x58] sm:$0xff] %v1595
    %1628 = vst [vmem:[#allocation4 + $0x60] sm:$0xff] %v1596
    %1629 = vst [vmem:[#allocation4 + $0x68] sm:$0xff] %v1597
    %1630 = vst [vmem:[#allocation4 + $0x70] sm:$0xff] %v1598
    %1631 = vst [vmem:[#allocation4 + $0x78] sm:$0xff] %v1599
    %1632 = vst [vmem:[#allocation4 + $0x80] sm:$0xff] %v1600
    %1633 = vst [vmem:[#allocation4 + $0x88] sm:$0xff] %v1601
    %1634 = vst [vmem:[#allocation4 + $0x90] sm:$0xff] %v1602
    %1635 = vst [vmem:[#allocation4 + $0x98] sm:$0xff] %v1603
    %1636 = vst [vmem:[#allocation4 + $0xa0] sm:$0xff] %v1604
    %1637 = vst [vmem:[#allocation4 + $0xa8] sm:$0xff] %v1605
    %1638 = vst [vmem:[#allocation4 + $0xb0] sm:$0xff] %v1606
    %1639 = vst [vmem:[#allocation4 + $0xb8] sm:$0xff] %v1607
    %1640 = vst [vmem:[#allocation4 + $0xc0] sm:$0xff] %v1608
    %1641 = vst [vmem:[#allocation4 + $0xc8] sm:$0xff] %v1609
    %1642 = vst [vmem:[#allocation4 + $0xd0] sm:$0xff] %v1610
    %1643 = vst [vmem:[#allocation4 + $0xd8] sm:$0xff] %v1611
    %1644 = vst [vmem:[#allocation4 + $0xe0] sm:$0xff] %v1612
    %1645 = vst [vmem:[#allocation4 + $0xe8] sm:$0xff] %v1613
    %1646 = vst [vmem:[#allocation4 + $0xf0] sm:$0xff] %v1614
    %1647 = vst [vmem:[#allocation4 + $0xf8] sm:$0xff] %v1615
    // Predicated region
    $region26: #{tpu_custom_call.1} parent=1 // pred_check
      _
    $region27: #{tpu_custom_call.1} parent=1 // pred_check_branch
      %1649 = sbr.rel (0) target = $region29
    $region28: #{tpu_custom_call.1} parent=1 // pred_region
      %s1651 = ssub.s32 4096, 4096
      %1652 = vsyncadd [#allocation3], %s1651
      %s1653 = sshll.u32 [#allocation2], 4
      %s1654 = int_to_ptr.vmem [resolvable:$true] %s1653
      %1659 = dma.vmem_to_hbm [thread:$0]  %s1654, 4096, %s6, [#allocation3], 128, 128, 8
    $region29: #{tpu_custom_call.1} parent=1 // pred_fallthru
      _
    // Predicated region
    $region30: #{tpu_custom_call.1} parent=1 // pred_check
      _
    $region31: #{tpu_custom_call.1} parent=1 // pred_check_branch
      %1661 = sbr.rel (0) target = $region33
    $region32: #{tpu_custom_call.1} parent=1 // pred_region
      %s1663 = ssub.s32 4096, 4096
      %1664 = vsyncadd [#allocation5], %s1663
      %s1665 = sshll.u32 [#allocation4], 4
      %s1666 = int_to_ptr.vmem [resolvable:$true] %s1665
      %1671 = dma.vmem_to_hbm [thread:$0]  %s1666, 4096, %s7, [#allocation5], 128, 128, 8
    $region33: #{tpu_custom_call.1} parent=1 // pred_fallthru
      _
    // Predicated region
    $region34: #{tpu_custom_call.1} parent=1 // pred_check
      _
    $region35: #{tpu_custom_call.1} parent=1 // pred_check_branch
      %1673 = sbr.rel (0) target = $region37
    $region36: #{tpu_custom_call.1} parent=1 // pred_region
      %1674 = dma.done [#allocation3], 4096
    $region37: #{tpu_custom_call.1} parent=1 // pred_fallthru
      _
    // Predicated region
    $region38: #{tpu_custom_call.1} parent=1 // pred_check
      _
    $region39: #{tpu_custom_call.1} parent=1 // pred_check_branch
      %1676 = sbr.rel (0) target = $region41
    $region40: #{tpu_custom_call.1} parent=1 // pred_region
      %1677 = dma.done [#allocation5], 4096
    $region41: #{tpu_custom_call.1} parent=1 // pred_fallthru
      _
    %1678 = vsyncpa [#allocation3], 1
    %1679 = vsyncpa [#allocation5], 1

</llo_original>
